<compile_context>
chip_gen: v7x
topology: tpu7x:2x2x1
jax: 0.10.0
libtpu: 0.0.40
codegen_flags: <defaults>
</compile_context>

<pallas_src>
import math

import jax
import jax.numpy as jnp
from jax.experimental import pallas as pl
from jax.experimental.pallas import tpu as pltpu

EPS = 1e-5
ROW_OFF = 8   # interior row offset inside the height-padded scratch (sublane aligned)


def inv_basic_block_kernel(x_ref, w1_ref, w2_ref, p_ref, g1_ref, b1_ref,
                           g2_ref, b2_ref, out_ref, pad_ref):
    N, H, WC = x_ref.shape            # lane-dense activations: (N, H, W*Cp)
    M = N * H
    cdt = pad_ref.dtype               # conv operand dtype (bf16 default / f32)

    # Zero ONLY the two height-halo rows the convs actually read.  Width
    # zero-padding is baked into the banded weights, so there is no lane halo.
    pad_ref[:, ROW_OFF - 1:ROW_OFF, :] = jnp.zeros((N, 1, WC), cdt)
    pad_ref[:, ROW_OFF + H:ROW_OFF + H + 1, :] = jnp.zeros((N, 1, WC), cdt)

    ones_m = jnp.ones((1, M), jnp.float32)    # MXU row-fold vector

    def conv3x3(w_ref):
        # One batched (N*H, W*Cp) @ (W*Cp, W*Cp) MXU matmul per kernel row dh.
        def row(dh):
            lhs = pad_ref[:, ROW_OFF - 1 + dh:ROW_OFF - 1 + dh + H, :]
            return jnp.dot(lhs.reshape(M, WC), w_ref[dh],
                           preferred_element_type=jnp.float32)
        return row(0) + row(1) + row(2)                        # (M, W*Cp) f32

    def batchnorm(a, g_cols, b_cols):
        # Training-mode BN (biased variance), two-pass centered variance.
        # p_ref is the channel-mean projector, pre-scaled by 1/(N*H*W), so each
        # fold+broadcast is a single small MXU matmul.
        col_sum = jnp.dot(ones_m, a, preferred_element_type=jnp.float32)
        mean_cols = jnp.dot(col_sum, p_ref[...],
                            preferred_element_type=jnp.float32)      # (1, W*Cp)
        centered = a - mean_cols
        sq_sum = jnp.dot(ones_m, centered * centered,
                         preferred_element_type=jnp.float32)
        var_cols = jnp.dot(sq_sum, p_ref[...],
                           preferred_element_type=jnp.float32)       # (1, W*Cp)
        scale = jax.lax.rsqrt(var_cols + EPS) * g_cols                # (1, W*Cp)
        return centered * scale + b_cols

    x_val = x_ref[...]                                        # (N, H, W*Cp) f32

    # ---- conv1 + bn1 + relu (interior store is sublane/lane aligned) ----
    pad_ref[:, ROW_OFF:ROW_OFF + H, :] = x_val.astype(cdt)
    o1 = jnp.maximum(batchnorm(conv3x3(w1_ref), g1_ref[...], b1_ref[...]), 0.0)

    # ---- conv2 + bn2 (halo rows are still zero; rewrite interior only) ----
    pad_ref[:, ROW_OFF:ROW_OFF + H, :] = o1.reshape(N, H, WC).astype(cdt)
    o2 = batchnorm(conv3x3(w2_ref), g2_ref[...], b2_ref[...])

    # ---- residual add (f32 identity) + relu, lane-dense unmasked store ----
    out_ref[...] = jnp.maximum(o2 + x_val.reshape(M, WC), 0.0).reshape(N, H, WC)


def _padded_channels(c, width):
    """Smallest Cp >= c making width*Cp a multiple of 128 (lane-dense output),
    with a fallback when that would blow up the channel count too much."""
    g = 128 // math.gcd(width, 128)
    cp = ((c + g - 1) // g) * g
    if cp > 4 * c:
        cp = ((c + 7) // 8) * 8     # fall back: sublane-packing multiple only
    return max(cp, c)


def _banded_row_weights(w_hwio, width, cp, conv_dtype):
    """(3,3,Cin,Cout) filter -> (3, width*cp, width*cp) banded row-weights with
    the width zero-padding baked in (boundary taps dropped):

      row_w[dh][(w+dw-1)*cp + ci, w*cp + co] = w_hwio[dh, dw, ci, co]

    so conv(x)[n, h, w*cp + co] = sum_dh row(n, h+dh-1) @ row_w[dh].
    """
    kh, kw, cin, cout = w_hwio.shape
    rows = []
    for dh in range(kh):
        m = jnp.zeros((width * cp, width * cp), jnp.float32)
        for dw in range(kw):
            blk = jnp.zeros((cp, cp), jnp.float32).at[:cin, :cout].set(
                w_hwio[dh, dw].astype(jnp.float32))
            shift = jnp.eye(width, k=1 - dw, dtype=jnp.float32)
            m = m + jnp.kron(shift, blk)
        rows.append(m)
    return jnp.stack(rows).astype(conv_dtype)


def _vmem_capacity_bytes():
    try:
        cap = getattr(pltpu.get_tpu_info(), "vmem_capacity_bytes", None)
        if cap:
            return int(cap)
    except Exception:
        pass
    return 64 * 1024 * 1024   # conservative default (v7x per-TensorCore VMEM)


def inv_basic_block(x_nchw, params, conv_dtype=jnp.bfloat16):
    """x_nchw: (N, C, H, W) float32 -> (N, C, H, W) float32.

    conv_dtype: dtype of the MXU operands (padded activations + banded
    weights).  bfloat16 is the default on all generations (the MXU is
    bf16-native on v5e as well); BN / residual math always stays f32.
    Pass jnp.float32 for bit-accuracy checks.
    """
    w1, g1, b1, w2, g2, b2 = params
    N, C, H, W = x_nchw.shape
    if w1.shape[2] != C or w1.shape[3] != C:
        raise ValueError("stride=1 / upsample=None InvBasicBlock requires "
                         "inplanes == planes for the residual add")

    Cp = _padded_channels(C, W)          # zero-pad channels -> lane-dense rows
    WC = W * Cp
    Hp = H + ROW_OFF + 1                 # rows ROW_OFF-1 .. ROW_OFF+H are used

    # NCHW -> NHWC, channel pad, flatten to lane-dense (N, H, W*Cp); kept f32
    # for the residual add.
    x_nhwc = jnp.transpose(x_nchw, (0, 2, 3, 1)).astype(jnp.float32)
    x_nhwc = jnp.pad(x_nhwc, ((0, 0), (0, 0), (0, 0), (0, Cp - C)))
    x2d = x_nhwc.reshape(N, H, WC)

    # Conv filters -> banded row-weight MXU operands (width padding baked in).
    w1b = _banded_row_weights(w1, W, Cp, conv_dtype)
    w2b = _banded_row_weights(w2, W, Cp, conv_dtype)

    # Channel-mean projector (fold the W copies of each channel and broadcast
    # back), pre-scaled by 1/(N*H*W) so BN mean/var come out of one matmul.
    sel = jnp.tile(jnp.eye(Cp, dtype=jnp.float32), (W, 1))      # (W*Cp, Cp)
    proj = (sel @ sel.T) / float(N * H * W)                      # (W*Cp, W*Cp)

    def cols(v):
        vp = jnp.pad(v.reshape(-1).astype(jnp.float32), (0, Cp - C))
        return jnp.tile(vp.reshape(1, Cp), (1, W))               # (1, W*Cp)

    g1c, b1c, g2c, b2c = cols(g1), cols(b1), cols(g2), cols(b2)

    esz = jnp.dtype(conv_dtype).itemsize
    vmem_bytes = (
        4 * N * H * WC              # x
        + 2 * 3 * WC * WC * esz     # banded weights
        + 4 * WC * WC               # BN projector
        + 4 * 4 * WC                # gammas / betas
        + 4 * N * H * WC            # out
        + N * Hp * WC * esz         # shared height-halo padded scratch
    )
    cap = _vmem_capacity_bytes()
    vmem_limit = int(max(min(2 * vmem_bytes + (8 << 20), (cap * 7) // 8),
                         4 << 20))

    out3d = pl.pallas_call(
        inv_basic_block_kernel,
        out_shape=jax.ShapeDtypeStruct((N, H, WC), jnp.float32),
        in_specs=[pl.BlockSpec(memory_space=pltpu.MemorySpace.VMEM)] * 8,
        out_specs=pl.BlockSpec(memory_space=pltpu.MemorySpace.VMEM),
        scratch_shapes=[
            pltpu.VMEM((N, Hp, WC), conv_dtype),   # shared padded scratch
        ],
        compiler_params=pltpu.CompilerParams(vmem_limit_bytes=vmem_limit),
    )(x2d, w1b, w2b, proj, g1c, b1c, g2c, b2c)

    # TODO(synk): for non-toy shapes, grid over N (and H tiles) with a two-pass
    # BN (pass 1: conv + per-channel sum/sumsq, pass 2: normalize+write), mark
    # the batch axis "parallel" for v7x's second TensorCore, and re-tile the
    # banded weights (Wt*Cp ~ 128/256) or switch to the 9x (N*H*W, C)@(C, C)
    # conv formulation once C >= 32.

    # lane-dense (N, H, W*Cp) -> drop channel padding -> NCHW
    out = out3d.reshape(N, H, W, Cp)[..., :C]
    return jnp.transpose(out, (0, 3, 1, 2))


def make_params(key, inplanes, planes):
    k1, k2 = jax.random.split(key)
    # PyTorch conv weight is (out, in, kh, kw); we keep HWIO = (kh, kw, in, out).
    w1 = 0.1 * jax.random.normal(k1, (3, 3, inplanes, planes), jnp.float32)
    w2 = 0.1 * jax.random.normal(k2, (3, 3, planes, planes), jnp.float32)
    g1 = jnp.ones((1, planes), jnp.float32)   # bn1.weight
    b1 = jnp.zeros((1, planes), jnp.float32)  # bn1.bias
    g2 = jnp.ones((1, planes), jnp.float32)   # bn2.weight
    b2 = jnp.zeros((1, planes), jnp.float32)  # bn2.bias
    return (w1, g1, b1, w2, g2, b2)


def ref_forward(x_nchw, params):
    """Pure-JAX reference of InvBasicBlock.forward (stride=1, upsample=None)."""
    w1, g1, b1, w2, g2, b2 = params

    def conv(x, w):
        return jax.lax.conv_general_dilated(
            x, w, window_strides=(1, 1), padding=((1, 1), (1, 1)),
            dimension_numbers=('NHWC', 'HWIO', 'NHWC'),
            precision=jax.lax.Precision.HIGHEST)

    def bn(x, g, b):
        mean = jnp.mean(x, axis=(0, 1, 2))
        var = jnp.mean((x - mean) ** 2, axis=(0, 1, 2))  # biased, like PyTorch
        return (x - mean) * jax.lax.rsqrt(var + EPS) * g.reshape(-1) + b.reshape(-1)

    x = jnp.transpose(x_nchw, (0, 2, 3, 1)).astype(jnp.float32)
    o = jnp.maximum(bn(conv(x, w1), g1, b1), 0.0)
    o = bn(conv(o, w2), g2, b2)
    o = jnp.maximum(o + x, 0.0)
    return jnp.transpose(o, (0, 3, 1, 2))


if __name__ == "__main__":
    key = jax.random.PRNGKey(0)
    kx, kp = jax.random.split(key)

    N, C, H, W = 2, 4, 16, 16          # inplanes == planes so identity add is valid
    x = jax.random.normal(kx, (N, C, H, W), jnp.float32)
    params = make_params(kp, C, C)

    ref = ref_forward(x, params)

    # f32 MXU operands (exactness check).
    out_f32 = jax.block_until_ready(inv_basic_block(x, params, jnp.float32))
    assert out_f32.shape == (N, C, H, W)
    err_f32 = float(jnp.max(jnp.abs(out_f32 - ref)))
    assert err_f32 < 1e-3, f"f32 max abs err {err_f32}"

    # bf16 MXU operands (default fast path on all generations); BN/residual
    # math stays f32.  BN batch statistics are computed from bf16-rounded conv
    # operands (f32 accumulation), hence the looser tolerance.
    out_bf16 = jax.block_until_ready(inv_basic_block(x, params))
    err_bf16 = float(jnp.max(jnp.abs(out_bf16 - ref)))
    assert jnp.allclose(out_bf16, ref, atol=5e-2, rtol=5e-2), \
        f"bf16 max abs err {err_bf16}"

    print("KERNEL_OK")
</pallas_src>

<mosaic_0001>
module attributes {stable_mosaic.version = 11 : i64} {
  func.func @inv_basic_block_kernel(%arg0: memref<2x16x128xf32, #tpu.memory_space<vmem>>, %arg1: memref<3x128x128xf32, #tpu.memory_space<vmem>>, %arg2: memref<3x128x128xf32, #tpu.memory_space<vmem>>, %arg3: memref<128x128xf32, #tpu.memory_space<vmem>>, %arg4: memref<1x128xf32, #tpu.memory_space<vmem>>, %arg5: memref<1x128xf32, #tpu.memory_space<vmem>>, %arg6: memref<1x128xf32, #tpu.memory_space<vmem>>, %arg7: memref<1x128xf32, #tpu.memory_space<vmem>>, %arg8: memref<2x16x128xf32, #tpu.memory_space<vmem>>, %arg9: memref<2x25x128xf32, #tpu.memory_space<vmem>>) attributes {dimension_semantics = [], scalar_prefetch = 0 : i64, scratch_operands = 1 : i64, tpu.core_type = #tpu.core_type<tc>} {
    %cst = arith.constant 0.000000e+00 : f32
    %0 = vector.broadcast %cst : f32 to vector<2x1x128xf32>
    %c0 = arith.constant 0 : index
    %c7 = arith.constant 7 : index
    %c0_0 = arith.constant 0 : index
    %1 = vector.load %arg9[%c0, %c7, %c0_0] : memref<2x25x128xf32, #tpu.memory_space<vmem>>, vector<2x1x128xf32>
    tpu.vector_store %arg9[%c0, %c7, %c0_0], %0 {strides = array<i32>} : memref<2x25x128xf32, #tpu.memory_space<vmem>>, vector<2x1x128xf32>,
    %cst_1 = arith.constant 0.000000e+00 : f32
    %2 = vector.broadcast %cst_1 : f32 to vector<2x1x128xf32>
    %c0_2 = arith.constant 0 : index
    %c24 = arith.constant 24 : index
    %c0_3 = arith.constant 0 : index
    %3 = vector.load %arg9[%c0_2, %c24, %c0_3] : memref<2x25x128xf32, #tpu.memory_space<vmem>>, vector<2x1x128xf32>
    tpu.vector_store %arg9[%c0_2, %c24, %c0_3], %2 {strides = array<i32>} : memref<2x25x128xf32, #tpu.memory_space<vmem>>, vector<2x1x128xf32>,
    %cst_4 = arith.constant 1.000000e+00 : f32
    %4 = vector.broadcast %cst_4 : f32 to vector<1x32xf32>
    %c0_5 = arith.constant 0 : index
    %c0_6 = arith.constant 0 : index
    %c0_7 = arith.constant 0 : index
    %5 = vector.load %arg0[%c0_5, %c0_6, %c0_7] : memref<2x16x128xf32, #tpu.memory_space<vmem>>, vector<2x16x128xf32>
    %c0_8 = arith.constant 0 : index
    %c8 = arith.constant 8 : index
    %c0_9 = arith.constant 0 : index
    %6 = vector.load %arg9[%c0_8, %c8, %c0_9] : memref<2x25x128xf32, #tpu.memory_space<vmem>>, vector<2x16x128xf32>
    tpu.vector_store %arg9[%c0_8, %c8, %c0_9], %5 {strides = array<i32>} : memref<2x25x128xf32, #tpu.memory_space<vmem>>, vector<2x16x128xf32>,
    %c0_10 = arith.constant 0 : index
    %c7_11 = arith.constant 7 : index
    %c0_12 = arith.constant 0 : index
    %7 = vector.load %arg9[%c0_10, %c7_11, %c0_12] : memref<2x25x128xf32, #tpu.memory_space<vmem>>, vector<2x16x128xf32>
    %8 = vector.shape_cast %7 : vector<2x16x128xf32> to vector<32x128xf32>
    %c0_13 = arith.constant 0 : index
    %c0_14 = arith.constant 0 : index
    %c0_15 = arith.constant 0 : index
    %9 = vector.load %arg1[%c0_13, %c0_14, %c0_15] : memref<3x128x128xf32, #tpu.memory_space<vmem>>, vector<1x128x128xf32>
    %10 = vector.shape_cast %9 : vector<1x128x128xf32> to vector<128x128xf32>
    %cst_16 = arith.constant dense<0.000000e+00> : vector<32x128xf32>
    %11 = tpu.matmul %8, %10, %cst_16 {dimension_numbers = #tpu.dot_dimension_numbers<[1], [0], [0], [1], [0, 0, 1, 1], [], []>} : vector<32x128xf32>, vector<128x128xf32>, vector<32x128xf32> -> vector<32x128xf32>
    %c0_17 = arith.constant 0 : index
    %c8_18 = arith.constant 8 : index
    %c0_19 = arith.constant 0 : index
    %12 = vector.load %arg9[%c0_17, %c8_18, %c0_19] : memref<2x25x128xf32, #tpu.memory_space<vmem>>, vector<2x16x128xf32>
    %13 = vector.shape_cast %12 : vector<2x16x128xf32> to vector<32x128xf32>
    %c1 = arith.constant 1 : index
    %c0_20 = arith.constant 0 : index
    %c0_21 = arith.constant 0 : index
    %14 = vector.load %arg1[%c1, %c0_20, %c0_21] : memref<3x128x128xf32, #tpu.memory_space<vmem>>, vector<1x128x128xf32>
    %15 = vector.shape_cast %14 : vector<1x128x128xf32> to vector<128x128xf32>
    %cst_22 = arith.constant dense<0.000000e+00> : vector<32x128xf32>
    %16 = tpu.matmul %13, %15, %cst_22 {dimension_numbers = #tpu.dot_dimension_numbers<[1], [0], [0], [1], [0, 0, 1, 1], [], []>} : vector<32x128xf32>, vector<128x128xf32>, vector<32x128xf32> -> vector<32x128xf32>
    %17 = arith.addf %11, %16 : vector<32x128xf32>
    %c0_23 = arith.constant 0 : index
    %c9 = arith.constant 9 : index
    %c0_24 = arith.constant 0 : index
    %18 = vector.load %arg9[%c0_23, %c9, %c0_24] : memref<2x25x128xf32, #tpu.memory_space<vmem>>, vector<2x16x128xf32>
    %19 = vector.shape_cast %18 : vector<2x16x128xf32> to vector<32x128xf32>
    %c2 = arith.constant 2 : index
    %c0_25 = arith.constant 0 : index
    %c0_26 = arith.constant 0 : index
    %20 = vector.load %arg1[%c2, %c0_25, %c0_26] : memref<3x128x128xf32, #tpu.memory_space<vmem>>, vector<1x128x128xf32>
    %21 = vector.shape_cast %20 : vector<1x128x128xf32> to vector<128x128xf32>
    %cst_27 = arith.constant dense<0.000000e+00> : vector<32x128xf32>
    %22 = tpu.matmul %19, %21, %cst_27 {dimension_numbers = #tpu.dot_dimension_numbers<[1], [0], [0], [1], [0, 0, 1, 1], [], []>} : vector<32x128xf32>, vector<128x128xf32>, vector<32x128xf32> -> vector<32x128xf32>
    %23 = arith.addf %17, %22 : vector<32x128xf32>
    %c0_28 = arith.constant 0 : index
    %c0_29 = arith.constant 0 : index
    %24 = vector.load %arg4[%c0_28, %c0_29] : memref<1x128xf32, #tpu.memory_space<vmem>>, vector<1x128xf32>
    %c0_30 = arith.constant 0 : index
    %c0_31 = arith.constant 0 : index
    %25 = vector.load %arg5[%c0_30, %c0_31] : memref<1x128xf32, #tpu.memory_space<vmem>>, vector<1x128xf32>
    %cst_32 = arith.constant dense<0.000000e+00> : vector<1x128xf32>
    %26 = tpu.matmul %4, %23, %cst_32 {dimension_numbers = #tpu.dot_dimension_numbers<[1], [0], [0], [1], [0, 0, 1, 1], [], []>} : vector<1x32xf32>, vector<32x128xf32>, vector<1x128xf32> -> vector<1x128xf32>
    %c0_33 = arith.constant 0 : index
    %c0_34 = arith.constant 0 : index
    %27 = vector.load %arg3[%c0_33, %c0_34] : memref<128x128xf32, #tpu.memory_space<vmem>>, vector<128x128xf32>
    %cst_35 = arith.constant dense<0.000000e+00> : vector<1x128xf32>
    %28 = tpu.matmul %26, %27, %cst_35 {dimension_numbers = #tpu.dot_dimension_numbers<[1], [0], [0], [1], [0, 0, 1, 1], [], []>} : vector<1x128xf32>, vector<128x128xf32>, vector<1x128xf32> -> vector<1x128xf32>
    %29 = vector.broadcast %28 : vector<1x128xf32> to vector<32x128xf32>
    %30 = arith.subf %23, %29 : vector<32x128xf32>
    %31 = arith.mulf %30, %30 : vector<32x128xf32>
    %cst_36 = arith.constant dense<0.000000e+00> : vector<1x128xf32>
    %32 = tpu.matmul %4, %31, %cst_36 {dimension_numbers = #tpu.dot_dimension_numbers<[1], [0], [0], [1], [0, 0, 1, 1], [], []>} : vector<1x32xf32>, vector<32x128xf32>, vector<1x128xf32> -> vector<1x128xf32>
    %c0_37 = arith.constant 0 : index
    %c0_38 = arith.constant 0 : index
    %33 = vector.load %arg3[%c0_37, %c0_38] : memref<128x128xf32, #tpu.memory_space<vmem>>, vector<128x128xf32>
    %cst_39 = arith.constant dense<0.000000e+00> : vector<1x128xf32>
    %34 = tpu.matmul %32, %33, %cst_39 {dimension_numbers = #tpu.dot_dimension_numbers<[1], [0], [0], [1], [0, 0, 1, 1], [], []>} : vector<1x128xf32>, vector<128x128xf32>, vector<1x128xf32> -> vector<1x128xf32>
    %cst_40 = arith.constant 9.99999974E-6 : f32
    %35 = vector.broadcast %cst_40 : f32 to vector<1x128xf32>
    %36 = arith.addf %34, %35 : vector<1x128xf32>
    %37 = math.rsqrt %36 : vector<1x128xf32>
    %38 = arith.mulf %37, %24 : vector<1x128xf32>
    %39 = vector.broadcast %38 : vector<1x128xf32> to vector<32x128xf32>
    %40 = arith.mulf %30, %39 : vector<32x128xf32>
    %41 = vector.broadcast %25 : vector<1x128xf32> to vector<32x128xf32>
    %42 = arith.addf %40, %41 : vector<32x128xf32>
    %cst_41 = arith.constant 0.000000e+00 : f32
    %43 = vector.broadcast %cst_41 : f32 to vector<32x128xf32>
    %44 = arith.maximumf %42, %43 : vector<32x128xf32>
    %45 = vector.shape_cast %44 : vector<32x128xf32> to vector<2x16x128xf32>
    %c0_42 = arith.constant 0 : index
    %c8_43 = arith.constant 8 : index
    %c0_44 = arith.constant 0 : index
    %46 = vector.load %arg9[%c0_42, %c8_43, %c0_44] : memref<2x25x128xf32, #tpu.memory_space<vmem>>, vector<2x16x128xf32>
    tpu.vector_store %arg9[%c0_42, %c8_43, %c0_44], %45 {strides = array<i32>} : memref<2x25x128xf32, #tpu.memory_space<vmem>>, vector<2x16x128xf32>,
    %c0_45 = arith.constant 0 : index
    %c7_46 = arith.constant 7 : index
    %c0_47 = arith.constant 0 : index
    %47 = vector.load %arg9[%c0_45, %c7_46, %c0_47] : memref<2x25x128xf32, #tpu.memory_space<vmem>>, vector<2x16x128xf32>
    %48 = vector.shape_cast %47 : vector<2x16x128xf32> to vector<32x128xf32>
    %c0_48 = arith.constant 0 : index
    %c0_49 = arith.constant 0 : index
    %c0_50 = arith.constant 0 : index
    %49 = vector.load %arg2[%c0_48, %c0_49, %c0_50] : memref<3x128x128xf32, #tpu.memory_space<vmem>>, vector<1x128x128xf32>
    %50 = vector.shape_cast %49 : vector<1x128x128xf32> to vector<128x128xf32>
    %cst_51 = arith.constant dense<0.000000e+00> : vector<32x128xf32>
    %51 = tpu.matmul %48, %50, %cst_51 {dimension_numbers = #tpu.dot_dimension_numbers<[1], [0], [0], [1], [0, 0, 1, 1], [], []>} : vector<32x128xf32>, vector<128x128xf32>, vector<32x128xf32> -> vector<32x128xf32>
    %c0_52 = arith.constant 0 : index
    %c8_53 = arith.constant 8 : index
    %c0_54 = arith.constant 0 : index
    %52 = vector.load %arg9[%c0_52, %c8_53, %c0_54] : memref<2x25x128xf32, #tpu.memory_space<vmem>>, vector<2x16x128xf32>
    %53 = vector.shape_cast %52 : vector<2x16x128xf32> to vector<32x128xf32>
    %c1_55 = arith.constant 1 : index
    %c0_56 = arith.constant 0 : index
    %c0_57 = arith.constant 0 : index
    %54 = vector.load %arg2[%c1_55, %c0_56, %c0_57] : memref<3x128x128xf32, #tpu.memory_space<vmem>>, vector<1x128x128xf32>
    %55 = vector.shape_cast %54 : vector<1x128x128xf32> to vector<128x128xf32>
    %cst_58 = arith.constant dense<0.000000e+00> : vector<32x128xf32>
    %56 = tpu.matmul %53, %55, %cst_58 {dimension_numbers = #tpu.dot_dimension_numbers<[1], [0], [0], [1], [0, 0, 1, 1], [], []>} : vector<32x128xf32>, vector<128x128xf32>, vector<32x128xf32> -> vector<32x128xf32>
    %57 = arith.addf %51, %56 : vector<32x128xf32>
    %c0_59 = arith.constant 0 : index
    %c9_60 = arith.constant 9 : index
    %c0_61 = arith.constant 0 : index
    %58 = vector.load %arg9[%c0_59, %c9_60, %c0_61] : memref<2x25x128xf32, #tpu.memory_space<vmem>>, vector<2x16x128xf32>
    %59 = vector.shape_cast %58 : vector<2x16x128xf32> to vector<32x128xf32>
    %c2_62 = arith.constant 2 : index
    %c0_63 = arith.constant 0 : index
    %c0_64 = arith.constant 0 : index
    %60 = vector.load %arg2[%c2_62, %c0_63, %c0_64] : memref<3x128x128xf32, #tpu.memory_space<vmem>>, vector<1x128x128xf32>
    %61 = vector.shape_cast %60 : vector<1x128x128xf32> to vector<128x128xf32>
    %cst_65 = arith.constant dense<0.000000e+00> : vector<32x128xf32>
    %62 = tpu.matmul %59, %61, %cst_65 {dimension_numbers = #tpu.dot_dimension_numbers<[1], [0], [0], [1], [0, 0, 1, 1], [], []>} : vector<32x128xf32>, vector<128x128xf32>, vector<32x128xf32> -> vector<32x128xf32>
    %63 = arith.addf %57, %62 : vector<32x128xf32>
    %c0_66 = arith.constant 0 : index
    %c0_67 = arith.constant 0 : index
    %64 = vector.load %arg6[%c0_66, %c0_67] : memref<1x128xf32, #tpu.memory_space<vmem>>, vector<1x128xf32>
    %c0_68 = arith.constant 0 : index
    %c0_69 = arith.constant 0 : index
    %65 = vector.load %arg7[%c0_68, %c0_69] : memref<1x128xf32, #tpu.memory_space<vmem>>, vector<1x128xf32>
    %cst_70 = arith.constant dense<0.000000e+00> : vector<1x128xf32>
    %66 = tpu.matmul %4, %63, %cst_70 {dimension_numbers = #tpu.dot_dimension_numbers<[1], [0], [0], [1], [0, 0, 1, 1], [], []>} : vector<1x32xf32>, vector<32x128xf32>, vector<1x128xf32> -> vector<1x128xf32>
    %c0_71 = arith.constant 0 : index
    %c0_72 = arith.constant 0 : index
    %67 = vector.load %arg3[%c0_71, %c0_72] : memref<128x128xf32, #tpu.memory_space<vmem>>, vector<128x128xf32>
    %cst_73 = arith.constant dense<0.000000e+00> : vector<1x128xf32>
    %68 = tpu.matmul %66, %67, %cst_73 {dimension_numbers = #tpu.dot_dimension_numbers<[1], [0], [0], [1], [0, 0, 1, 1], [], []>} : vector<1x128xf32>, vector<128x128xf32>, vector<1x128xf32> -> vector<1x128xf32>
    %69 = vector.broadcast %68 : vector<1x128xf32> to vector<32x128xf32>
    %70 = arith.subf %63, %69 : vector<32x128xf32>
    %71 = arith.mulf %70, %70 : vector<32x128xf32>
    %cst_74 = arith.constant dense<0.000000e+00> : vector<1x128xf32>
    %72 = tpu.matmul %4, %71, %cst_74 {dimension_numbers = #tpu.dot_dimension_numbers<[1], [0], [0], [1], [0, 0, 1, 1], [], []>} : vector<1x32xf32>, vector<32x128xf32>, vector<1x128xf32> -> vector<1x128xf32>
    %c0_75 = arith.constant 0 : index
    %c0_76 = arith.constant 0 : index
    %73 = vector.load %arg3[%c0_75, %c0_76] : memref<128x128xf32, #tpu.memory_space<vmem>>, vector<128x128xf32>
    %cst_77 = arith.constant dense<0.000000e+00> : vector<1x128xf32>
    %74 = tpu.matmul %72, %73, %cst_77 {dimension_numbers = #tpu.dot_dimension_numbers<[1], [0], [0], [1], [0, 0, 1, 1], [], []>} : vector<1x128xf32>, vector<128x128xf32>, vector<1x128xf32> -> vector<1x128xf32>
    %cst_78 = arith.constant 9.99999974E-6 : f32
    %75 = vector.broadcast %cst_78 : f32 to vector<1x128xf32>
    %76 = arith.addf %74, %75 : vector<1x128xf32>
    %77 = math.rsqrt %76 : vector<1x128xf32>
    %78 = arith.mulf %77, %64 : vector<1x128xf32>
    %79 = vector.broadcast %78 : vector<1x128xf32> to vector<32x128xf32>
    %80 = arith.mulf %70, %79 : vector<32x128xf32>
    %81 = vector.broadcast %65 : vector<1x128xf32> to vector<32x128xf32>
    %82 = arith.addf %80, %81 : vector<32x128xf32>
    %83 = vector.shape_cast %5 : vector<2x16x128xf32> to vector<32x128xf32>
    %84 = arith.addf %82, %83 : vector<32x128xf32>
    %cst_79 = arith.constant 0.000000e+00 : f32
    %85 = vector.broadcast %cst_79 : f32 to vector<32x128xf32>
    %86 = arith.maximumf %84, %85 : vector<32x128xf32>
    %87 = vector.shape_cast %86 : vector<32x128xf32> to vector<2x16x128xf32>
    %c0_80 = arith.constant 0 : index
    %c0_81 = arith.constant 0 : index
    %c0_82 = arith.constant 0 : index
    %88 = vector.load %arg8[%c0_80, %c0_81, %c0_82] : memref<2x16x128xf32, #tpu.memory_space<vmem>>, vector<2x16x128xf32>
    tpu.vector_store %arg8[%c0_80, %c0_81, %c0_82], %87 {strides = array<i32>} : memref<2x16x128xf32, #tpu.memory_space<vmem>>, vector<2x16x128xf32>,
    return
  }
}

</mosaic_0001>

<llo_original>
// kernel: tpu_custom_call.1
$region0: #{tpu_custom_call.1}
  #allocation0 [shape = 'u32[]', space=smem, size = 0x4, offset = 0x4, fixed_abs, tag = 'smem constant byte address 0x4 - core index']
  #allocation1 [shape = 'u32[144,128]{1,0:T(1,128)}', space=vmem, size = 0x12000, scoped, tag = 'internal scratch']
  #allocation2 [shape = 'f32[2,25,128]{2,1,0:T(8,128)}', space=vmem, size = 0x8000, scoped, tag = 'scratch operand']
  %s0 = inlined_call_operand.hbm [shape: f32[2,16,128], index: 0, kind: input, shape index: {}]
  %s1 = inlined_call_operand.hbm [shape: f32[3,128,128], index: 1, kind: input, shape index: {}]
  %s2 = inlined_call_operand.hbm [shape: f32[3,128,128], index: 2, kind: input, shape index: {}]
  %s3 = inlined_call_operand.hbm [shape: f32[128,128], index: 3, kind: input, shape index: {}]
  %s4 = inlined_call_operand.vmem [shape: f32[1,128], index: 4, kind: input, shape index: {}]
  %s5 = inlined_call_operand.vmem [shape: f32[1,128], index: 5, kind: input, shape index: {}]
  %s6 = inlined_call_operand.vmem [shape: f32[1,128], index: 6, kind: input, shape index: {}]
  %s7 = inlined_call_operand.vmem [shape: f32[1,128], index: 7, kind: input, shape index: {}]
  %s8 = inlined_call_operand.hbm [shape: f32[2,16,128], index: 8, kind: output, shape index: {}]
  %s9 = sld [smem:[#allocation0]]
  $region58: #{tpu_custom_call.1} parent=0
    _
  %s11 = ssub.s32 1, %s9
  %s12 = scalar_select 0, %s11, %s9
  $region1: #{tpu_custom_call.1} parent=0
    #allocation3 [shape = 'u8[16384]{0}', space=vmem, size = 0x4000, scoped, tag = 'input window, operand 0, single buffered']
    #allocation4 [shape = 's32[1]{0}', space=sflag, size = 0x4, scoped, tag = 'scoped memory for tpu_custom_call.1']
    #allocation5 [shape = 's32[1]{0}', space=sflag, size = 0x4, scoped, tag = 'scoped memory for tpu_custom_call.1']
    #allocation6 [shape = 'u8[196608]{0}', space=vmem, size = 0x30000, scoped, tag = 'input window, operand 1, single buffered']
    #allocation7 [shape = 's32[1]{0}', space=sflag, size = 0x4, scoped, tag = 'scoped memory for tpu_custom_call.1']
    #allocation8 [shape = 'u8[196608]{0}', space=vmem, size = 0x30000, scoped, tag = 'input window, operand 2, single buffered']
    #allocation9 [shape = 'u8[65536]{0}', space=vmem, size = 0x10000, scoped, tag = 'input window, operand 3, single buffered']
    #allocation10 [shape = 's32[1]{0}', space=sflag, size = 0x4, scoped, tag = 'scoped memory for tpu_custom_call.1']
    #allocation11 [shape = 'u8[16384]{0}', space=vmem, size = 0x4000, scoped, tag = 'output window, operand 0, single buffered']
    %13 = vsyncpa [#allocation4], 0
    %14 = vsyncpa [#allocation7], 0
    %15 = vsyncpa [#allocation10], 0
    %16 = vsyncpa [#allocation5], 0
    // Predicated region
    $region2: #{tpu_custom_call.1} parent=1 // pred_check
      _
    $region3: #{tpu_custom_call.1} parent=1 // pred_check_branch
      %18 = sbr.rel (0) target = $region5
    $region4: #{tpu_custom_call.1} parent=1 // pred_region
      %s20 = ssub.s32 512, 512
      %21 = vsyncadd [#allocation4], %s20
      %s22 = sshll.u32 [#allocation3], 4
      %s23 = int_to_ptr.vmem [resolvable:$true] %s22
      %28 = dma.hbm_to_vmem [thread:$0]  %s0, 512, %s23, [#allocation4], 128, 128, 8
    $region5: #{tpu_custom_call.1} parent=1 // pred_fallthru
      _
    // Predicated region
    $region6: #{tpu_custom_call.1} parent=1 // pred_check
      _
    $region7: #{tpu_custom_call.1} parent=1 // pred_check_branch
      %30 = sbr.rel (0) target = $region9
    $region8: #{tpu_custom_call.1} parent=1 // pred_region
      %s32 = ssub.s32 6144, 6144
      %33 = vsyncadd [#allocation7], %s32
      %s34 = sshll.u32 [#allocation6], 4
      %s35 = int_to_ptr.vmem [resolvable:$true] %s34
      %40 = dma.hbm_to_vmem [thread:$0]  %s1, 6144, %s35, [#allocation7], 128, 128, 8
    $region9: #{tpu_custom_call.1} parent=1 // pred_fallthru
      _
    // Predicated region
    $region10: #{tpu_custom_call.1} parent=1 // pred_check
      _
    $region11: #{tpu_custom_call.1} parent=1 // pred_check_branch
      %42 = sbr.rel (0) target = $region13
    $region12: #{tpu_custom_call.1} parent=1 // pred_region
      %s44 = ssub.s32 6144, 6144
      %45 = vsyncadd [#allocation7], %s44
      %s46 = sshll.u32 [#allocation8], 4
      %s47 = int_to_ptr.vmem [resolvable:$true] %s46
      %52 = dma.hbm_to_vmem [thread:$0]  %s2, 6144, %s47, [#allocation7], 128, 128, 8
    $region13: #{tpu_custom_call.1} parent=1 // pred_fallthru
      _
    // Predicated region
    $region14: #{tpu_custom_call.1} parent=1 // pred_check
      _
    $region15: #{tpu_custom_call.1} parent=1 // pred_check_branch
      %54 = sbr.rel (0) target = $region17
    $region16: #{tpu_custom_call.1} parent=1 // pred_region
      %s56 = ssub.s32 2048, 2048
      %57 = vsyncadd [#allocation10], %s56
      %s58 = sshll.u32 [#allocation9], 4
      %s59 = int_to_ptr.vmem [resolvable:$true] %s58
      %64 = dma.hbm_to_vmem [thread:$0]  %s3, 2048, %s59, [#allocation10], 128, 128, 8
    $region17: #{tpu_custom_call.1} parent=1 // pred_fallthru
      _
    // Predicated region
    $region18: #{tpu_custom_call.1} parent=1 // pred_check
      _
    $region19: #{tpu_custom_call.1} parent=1 // pred_check_branch
      %66 = sbr.rel (0) target = $region21
    $region20: #{tpu_custom_call.1} parent=1 // pred_region
      _
    $region21: #{tpu_custom_call.1} parent=1 // pred_fallthru
      _
    // Predicated region
    $region22: #{tpu_custom_call.1} parent=1 // pred_check
      _
    $region23: #{tpu_custom_call.1} parent=1 // pred_check_branch
      %68 = sbr.rel (0) target = $region25
    $region24: #{tpu_custom_call.1} parent=1 // pred_region
      _
    $region25: #{tpu_custom_call.1} parent=1 // pred_fallthru
      _
    // Predicated region
    $region26: #{tpu_custom_call.1} parent=1 // pred_check
      _
    $region27: #{tpu_custom_call.1} parent=1 // pred_check_branch
      %70 = sbr.rel (0) target = $region29
    $region28: #{tpu_custom_call.1} parent=1 // pred_region
      _
    $region29: #{tpu_custom_call.1} parent=1 // pred_fallthru
      _
    // Predicated region
    $region30: #{tpu_custom_call.1} parent=1 // pred_check
      _
    $region31: #{tpu_custom_call.1} parent=1 // pred_check_branch
      %72 = sbr.rel (0) target = $region33
    $region32: #{tpu_custom_call.1} parent=1 // pred_region
      _
    $region33: #{tpu_custom_call.1} parent=1 // pred_fallthru
      _
    // Predicated region
    $region34: #{tpu_custom_call.1} parent=1 // pred_check
      _
    $region35: #{tpu_custom_call.1} parent=1 // pred_check_branch
      %74 = sbr.rel (0) target = $region37
    $region36: #{tpu_custom_call.1} parent=1 // pred_region
      %75 = dma.done [#allocation4], 512
    $region37: #{tpu_custom_call.1} parent=1 // pred_fallthru
      _
    // Predicated region
    $region38: #{tpu_custom_call.1} parent=1 // pred_check
      _
    $region39: #{tpu_custom_call.1} parent=1 // pred_check_branch
      %77 = sbr.rel (0) target = $region41
    $region40: #{tpu_custom_call.1} parent=1 // pred_region
      %78 = dma.done [#allocation7], 6144
    $region41: #{tpu_custom_call.1} parent=1 // pred_fallthru
      _
    // Predicated region
    $region42: #{tpu_custom_call.1} parent=1 // pred_check
      _
    $region43: #{tpu_custom_call.1} parent=1 // pred_check_branch
      %80 = sbr.rel (0) target = $region45
    $region44: #{tpu_custom_call.1} parent=1 // pred_region
      %81 = dma.done [#allocation7], 6144
    $region45: #{tpu_custom_call.1} parent=1 // pred_fallthru
      _
    // Predicated region
    $region46: #{tpu_custom_call.1} parent=1 // pred_check
      _
    $region47: #{tpu_custom_call.1} parent=1 // pred_check_branch
      %83 = sbr.rel (0) target = $region49
    $region48: #{tpu_custom_call.1} parent=1 // pred_region
      %84 = dma.done [#allocation10], 2048
    $region49: #{tpu_custom_call.1} parent=1 // pred_fallthru
      _
    %85 = vst [vmem:[#allocation2 + $0x7] sm:$0x1] 0.0
    %86 = vst [vmem:[#allocation2 + $0x27] sm:$0x1] 0.0
    %87 = vst [vmem:[#allocation2 + $0x18] sm:$0x1] 0.0
    %88 = vst [vmem:[#allocation2 + $0x38] sm:$0x1] 0.0
    %v89 = vld [vmem:[#allocation3] sm:$0xff]
    %v90 = vld [vmem:[#allocation3 + $0x8] sm:$0xff]
    %v91 = vld [vmem:[#allocation3 + $0x10] sm:$0xff]
    %v92 = vld [vmem:[#allocation3 + $0x18] sm:$0xff]
    %93 = vst [vmem:[#allocation2 + $0x8] sm:$0xff] %v89
    %94 = vst [vmem:[#allocation2 + $0x10] sm:$0xff] %v90
    %95 = vst [vmem:[#allocation2 + $0x28] sm:$0xff] %v91
    %96 = vst [vmem:[#allocation2 + $0x30] sm:$0xff] %v92
    %v97 = vld [vmem:[#allocation2 + $0x7] sm:$0xff]
    %v98 = vld [vmem:[#allocation2 + $0xf] sm:$0xff]
    %v99 = vld [vmem:[#allocation2 + $0x27] sm:$0xff]
    %v100 = vld [vmem:[#allocation2 + $0x2f] sm:$0xff]
    %v101 = vld [vmem:[#allocation6] sm:$0xff]
    %v102 = vld [vmem:[#allocation6 + $0x8] sm:$0xff]
    %v103 = vld [vmem:[#allocation6 + $0x10] sm:$0xff]
    %v104 = vld [vmem:[#allocation6 + $0x18] sm:$0xff]
    %v105 = vld [vmem:[#allocation6 + $0x20] sm:$0xff]
    %v106 = vld [vmem:[#allocation6 + $0x28] sm:$0xff]
    %v107 = vld [vmem:[#allocation6 + $0x30] sm:$0xff]
    %v108 = vld [vmem:[#allocation6 + $0x38] sm:$0xff]
    %v109 = vld [vmem:[#allocation6 + $0x40] sm:$0xff]
    %v110 = vld [vmem:[#allocation6 + $0x48] sm:$0xff]
    %v111 = vld [vmem:[#allocation6 + $0x50] sm:$0xff]
    %v112 = vld [vmem:[#allocation6 + $0x58] sm:$0xff]
    %v113 = vld [vmem:[#allocation6 + $0x60] sm:$0xff]
    %v114 = vld [vmem:[#allocation6 + $0x68] sm:$0xff]
    %v115 = vld [vmem:[#allocation6 + $0x70] sm:$0xff]
    %v116 = vld [vmem:[#allocation6 + $0x78] sm:$0xff]
    %v117 = vld [vmem:[#allocation2 + $0x8] sm:$0xff]
    %v118 = vld [vmem:[#allocation2 + $0x10] sm:$0xff]
    %v119 = vld [vmem:[#allocation2 + $0x28] sm:$0xff]
    %v120 = vld [vmem:[#allocation2 + $0x30] sm:$0xff]
    %s121 = scalar_lea.vmem [#allocation6], 128
    %v122 = vld [vmem:[%s121] sm:$0xff]
    %v123 = vld [vmem:[%s121 + $0x8] sm:$0xff]
    %v124 = vld [vmem:[%s121 + $0x10] sm:$0xff]
    %v125 = vld [vmem:[%s121 + $0x18] sm:$0xff]
    %v126 = vld [vmem:[%s121 + $0x20] sm:$0xff]
    %v127 = vld [vmem:[%s121 + $0x28] sm:$0xff]
    %v128 = vld [vmem:[%s121 + $0x30] sm:$0xff]
    %v129 = vld [vmem:[%s121 + $0x38] sm:$0xff]
    %v130 = vld [vmem:[%s121 + $0x40] sm:$0xff]
    %v131 = vld [vmem:[%s121 + $0x48] sm:$0xff]
    %v132 = vld [vmem:[%s121 + $0x50] sm:$0xff]
    %v133 = vld [vmem:[%s121 + $0x58] sm:$0xff]
    %v134 = vld [vmem:[%s121 + $0x60] sm:$0xff]
    %v135 = vld [vmem:[%s121 + $0x68] sm:$0xff]
    %v136 = vld [vmem:[%s121 + $0x70] sm:$0xff]
    %v137 = vld [vmem:[%s121 + $0x78] sm:$0xff]
    %138 = vmatprep.subr.mxu0 0.0
    %139 = vmatpush1.msra.mxu0 %v122
    %140 = vmatprep.subr.mxu0 0.0
    %141 = vmatpush1.msra.mxu0 %v123
    %142 = vmatprep.subr.mxu0 0.0
    %143 = vmatpush1.msra.mxu0 %v124
    %144 = vmatprep.subr.mxu0 0.0
    %145 = vmatpush1.msra.mxu0 %v125
    %146 = vmatprep.subr.mxu0 0.0
    %147 = vmatpush1.msra.mxu0 %v126
    %148 = vmatprep.subr.mxu0 0.0
    %149 = vmatpush1.msra.mxu0 %v127
    %150 = vmatprep.subr.mxu0 0.0
    %151 = vmatpush1.msra.mxu0 %v128
    %152 = vmatprep.subr.mxu0 0.0
    %153 = vmatpush1.msra.mxu0 %v129
    %154 = vmatprep.subr.mxu0 0.0
    %155 = vmatpush1.msra.mxu0 %v130
    %156 = vmatprep.subr.mxu0 0.0
    %157 = vmatpush1.msra.mxu0 %v131
    %158 = vmatprep.subr.mxu0 0.0
    %159 = vmatpush1.msra.mxu0 %v132
    %160 = vmatprep.subr.mxu0 0.0
    %161 = vmatpush1.msra.mxu0 %v133
    %162 = vmatprep.subr.mxu0 0.0
    %163 = vmatpush1.msra.mxu0 %v134
    %164 = vmatprep.subr.mxu0 0.0
    %165 = vmatpush1.msra.mxu0 %v135
    %166 = vmatprep.subr.mxu0 0.0
    %167 = vmatpush1.msra.mxu0 %v136
    %168 = vmatprep.subr.mxu0 0.0
    %169 = vmatpush1.msra.mxu0 %v137
    %170 = vmatprep.subr.mxu0 0.0
    %171 = vmatpush1.msra.mxu0 0.0
    %172 = vmatprep.subr.mxu0 0.0
    %173 = vmatpush1.msra.mxu0 0.0
    %174 = vmatprep.subr.mxu0 0.0
    %175 = vmatpush1.msra.mxu0 0.0
    %176 = vmatprep.subr.mxu0 0.0
    %177 = vmatpush1.msra.mxu0 0.0
    %178 = vmatprep.subr.mxu0 0.0
    %179 = vmatpush1.msra.mxu0 0.0
    %180 = vmatprep.subr.mxu0 0.0
    %181 = vmatpush1.msra.mxu0 0.0
    %182 = vmatprep.subr.mxu0 0.0
    %183 = vmatpush1.msra.mxu0 0.0
    %184 = vmatprep.subr.mxu0 0.0
    %185 = vmatpush1.msra.mxu0 0.0
    %186 = vmatprep.subr.mxu0 0.0
    %187 = vmatpush1.msra.mxu0 0.0
    %188 = vmatprep.subr.mxu0 0.0
    %189 = vmatpush1.msra.mxu0 0.0
    %190 = vmatprep.subr.mxu0 0.0
    %191 = vmatpush1.msra.mxu0 0.0
    %192 = vmatprep.subr.mxu0 0.0
    %193 = vmatpush1.msra.mxu0 0.0
    %194 = vmatprep.subr.mxu0 0.0
    %195 = vmatpush1.msra.mxu0 0.0
    %196 = vmatprep.subr.mxu0 0.0
    %197 = vmatpush1.msra.mxu0 0.0
    %198 = vmatprep.subr.mxu0 0.0
    %199 = vmatpush1.msra.mxu0 0.0
    %200 = vmatprep.subr.mxu0 0.0
    %201 = vmatpush1.msra.mxu0 0.0
    %202 = vmatprep.mubr.f32.mxu0 0.0
    %203 = vmatmul.mubr.f32.gmra.mrb[0].mxu0 %v117
    %v204 = vpop.f32.mrb[0].mxu0
    %v205 = vadd.f32 0.0, %v204
    %v206 = vpop.f32.mrb[0].mxu0
    %207 = vmatprep.mubr.f32.mxu0 0.0
    %208 = vmatmul.mubr.f32.gmra.mrb[0].mxu0 %v118
    %v209 = vpop.f32.mrb[0].mxu0
    %v210 = vadd.f32 0.0, %v209
    %v211 = vpop.f32.mrb[0].mxu0
    %212 = vmatprep.mubr.f32.mxu0 0.0
    %213 = vmatmul.mubr.f32.gmra.mrb[0].mxu0 %v119
    %v214 = vpop.f32.mrb[0].mxu0
    %v215 = vadd.f32 0.0, %v214
    %v216 = vpop.f32.mrb[0].mxu0
    %217 = vmatprep.mubr.f32.mxu0 0.0
    %218 = vmatmul.mubr.f32.gmra.mrb[0].mxu0 %v120
    %v219 = vpop.f32.mrb[0].mxu0
    %v220 = vadd.f32 0.0, %v219
    %v221 = vpop.f32.mrb[0].mxu0
    %222 = vdwg.mxu0
    %223 = vmatprep.subr.mxu0 0.0
    %224 = vmatpush1.msra.mxu0 %v101
    %225 = vmatprep.subr.mxu0 0.0
    %226 = vmatpush1.msra.mxu0 %v102
    %227 = vmatprep.subr.mxu0 0.0
    %228 = vmatpush1.msra.mxu0 %v103
    %229 = vmatprep.subr.mxu0 0.0
    %230 = vmatpush1.msra.mxu0 %v104
    %231 = vmatprep.subr.mxu0 0.0
    %232 = vmatpush1.msra.mxu0 %v105
    %233 = vmatprep.subr.mxu0 0.0
    %234 = vmatpush1.msra.mxu0 %v106
    %235 = vmatprep.subr.mxu0 0.0
    %236 = vmatpush1.msra.mxu0 %v107
    %237 = vmatprep.subr.mxu0 0.0
    %238 = vmatpush1.msra.mxu0 %v108
    %239 = vmatprep.subr.mxu0 0.0
    %240 = vmatpush1.msra.mxu0 %v109
    %241 = vmatprep.subr.mxu0 0.0
    %242 = vmatpush1.msra.mxu0 %v110
    %243 = vmatprep.subr.mxu0 0.0
    %244 = vmatpush1.msra.mxu0 %v111
    %245 = vmatprep.subr.mxu0 0.0
    %246 = vmatpush1.msra.mxu0 %v112
    %247 = vmatprep.subr.mxu0 0.0
    %248 = vmatpush1.msra.mxu0 %v113
    %249 = vmatprep.subr.mxu0 0.0
    %250 = vmatpush1.msra.mxu0 %v114
    %251 = vmatprep.subr.mxu0 0.0
    %252 = vmatpush1.msra.mxu0 %v115
    %253 = vmatprep.subr.mxu0 0.0
    %254 = vmatpush1.msra.mxu0 %v116
    %255 = vmatprep.subr.mxu0 0.0
    %256 = vmatpush1.msra.mxu0 0.0
    %257 = vmatprep.subr.mxu0 0.0
    %258 = vmatpush1.msra.mxu0 0.0
    %259 = vmatprep.subr.mxu0 0.0
    %260 = vmatpush1.msra.mxu0 0.0
    %261 = vmatprep.subr.mxu0 0.0
    %262 = vmatpush1.msra.mxu0 0.0
    %263 = vmatprep.subr.mxu0 0.0
    %264 = vmatpush1.msra.mxu0 0.0
    %265 = vmatprep.subr.mxu0 0.0
    %266 = vmatpush1.msra.mxu0 0.0
    %267 = vmatprep.subr.mxu0 0.0
    %268 = vmatpush1.msra.mxu0 0.0
    %269 = vmatprep.subr.mxu0 0.0
    %270 = vmatpush1.msra.mxu0 0.0
    %271 = vmatprep.subr.mxu0 0.0
    %272 = vmatpush1.msra.mxu0 0.0
    %273 = vmatprep.subr.mxu0 0.0
    %274 = vmatpush1.msra.mxu0 0.0
    %275 = vmatprep.subr.mxu0 0.0
    %276 = vmatpush1.msra.mxu0 0.0
    %277 = vmatprep.subr.mxu0 0.0
    %278 = vmatpush1.msra.mxu0 0.0
    %279 = vmatprep.subr.mxu0 0.0
    %280 = vmatpush1.msra.mxu0 0.0
    %281 = vmatprep.subr.mxu0 0.0
    %282 = vmatpush1.msra.mxu0 0.0
    %283 = vmatprep.subr.mxu0 0.0
    %284 = vmatpush1.msra.mxu0 0.0
    %285 = vmatprep.subr.mxu0 0.0
    %286 = vmatpush1.msra.mxu0 0.0
    %287 = vmatprep.mubr.f32.mxu0 0.0
    %288 = vmatmul.mubr.f32.gmra.mrb[0].mxu0 %v97
    %v289 = vpop.f32.mrb[0].mxu0
    %v290 = vadd.f32 %v205, %v289
    %v291 = vpop.f32.mrb[0].mxu0
    %292 = vmatprep.mubr.f32.mxu0 0.0
    %293 = vmatmul.mubr.f32.gmra.mrb[0].mxu0 %v98
    %v294 = vpop.f32.mrb[0].mxu0
    %v295 = vadd.f32 %v210, %v294
    %v296 = vpop.f32.mrb[0].mxu0
    %297 = vmatprep.mubr.f32.mxu0 0.0
    %298 = vmatmul.mubr.f32.gmra.mrb[0].mxu0 %v99
    %v299 = vpop.f32.mrb[0].mxu0
    %v300 = vadd.f32 %v215, %v299
    %v301 = vpop.f32.mrb[0].mxu0
    %302 = vmatprep.mubr.f32.mxu0 0.0
    %303 = vmatmul.mubr.f32.gmra.mrb[0].mxu0 %v100
    %v304 = vpop.f32.mrb[0].mxu0
    %v305 = vadd.f32 %v220, %v304
    %v306 = vpop.f32.mrb[0].mxu0
    %307 = vdwg.mxu0
    %v308 = vld [vmem:[#allocation2 + $0x9] sm:$0xff]
    %v309 = vld [vmem:[#allocation2 + $0x11] sm:$0xff]
    %v310 = vld [vmem:[#allocation2 + $0x29] sm:$0xff]
    %v311 = vld [vmem:[#allocation2 + $0x31] sm:$0xff]
    %s312 = scalar_lea.vmem [#allocation6], 256
    %v313 = vld [vmem:[%s312] sm:$0xff]
    %v314 = vld [vmem:[%s312 + $0x8] sm:$0xff]
    %v315 = vld [vmem:[%s312 + $0x10] sm:$0xff]
    %v316 = vld [vmem:[%s312 + $0x18] sm:$0xff]
    %v317 = vld [vmem:[%s312 + $0x20] sm:$0xff]
    %v318 = vld [vmem:[%s312 + $0x28] sm:$0xff]
    %v319 = vld [vmem:[%s312 + $0x30] sm:$0xff]
    %v320 = vld [vmem:[%s312 + $0x38] sm:$0xff]
    %v321 = vld [vmem:[%s312 + $0x40] sm:$0xff]
    %v322 = vld [vmem:[%s312 + $0x48] sm:$0xff]
    %v323 = vld [vmem:[%s312 + $0x50] sm:$0xff]
    %v324 = vld [vmem:[%s312 + $0x58] sm:$0xff]
    %v325 = vld [vmem:[%s312 + $0x60] sm:$0xff]
    %v326 = vld [vmem:[%s312 + $0x68] sm:$0xff]
    %v327 = vld [vmem:[%s312 + $0x70] sm:$0xff]
    %v328 = vld [vmem:[%s312 + $0x78] sm:$0xff]
    %329 = vmatprep.subr.mxu0 0.0
    %330 = vmatpush1.msra.mxu0 %v313
    %331 = vmatprep.subr.mxu0 0.0
    %332 = vmatpush1.msra.mxu0 %v314
    %333 = vmatprep.subr.mxu0 0.0
    %334 = vmatpush1.msra.mxu0 %v315
    %335 = vmatprep.subr.mxu0 0.0
    %336 = vmatpush1.msra.mxu0 %v316
    %337 = vmatprep.subr.mxu0 0.0
    %338 = vmatpush1.msra.mxu0 %v317
    %339 = vmatprep.subr.mxu0 0.0
    %340 = vmatpush1.msra.mxu0 %v318
    %341 = vmatprep.subr.mxu0 0.0
    %342 = vmatpush1.msra.mxu0 %v319
    %343 = vmatprep.subr.mxu0 0.0
    %344 = vmatpush1.msra.mxu0 %v320
    %345 = vmatprep.subr.mxu0 0.0
    %346 = vmatpush1.msra.mxu0 %v321
    %347 = vmatprep.subr.mxu0 0.0
    %348 = vmatpush1.msra.mxu0 %v322
    %349 = vmatprep.subr.mxu0 0.0
    %350 = vmatpush1.msra.mxu0 %v323
    %351 = vmatprep.subr.mxu0 0.0
    %352 = vmatpush1.msra.mxu0 %v324
    %353 = vmatprep.subr.mxu0 0.0
    %354 = vmatpush1.msra.mxu0 %v325
    %355 = vmatprep.subr.mxu0 0.0
    %356 = vmatpush1.msra.mxu0 %v326
    %357 = vmatprep.subr.mxu0 0.0
    %358 = vmatpush1.msra.mxu0 %v327
    %359 = vmatprep.subr.mxu0 0.0
    %360 = vmatpush1.msra.mxu0 %v328
    %361 = vmatprep.subr.mxu0 0.0
    %362 = vmatpush1.msra.mxu0 0.0
    %363 = vmatprep.subr.mxu0 0.0
    %364 = vmatpush1.msra.mxu0 0.0
    %365 = vmatprep.subr.mxu0 0.0
    %366 = vmatpush1.msra.mxu0 0.0
    %367 = vmatprep.subr.mxu0 0.0
    %368 = vmatpush1.msra.mxu0 0.0
    %369 = vmatprep.subr.mxu0 0.0
    %370 = vmatpush1.msra.mxu0 0.0
    %371 = vmatprep.subr.mxu0 0.0
    %372 = vmatpush1.msra.mxu0 0.0
    %373 = vmatprep.subr.mxu0 0.0
    %374 = vmatpush1.msra.mxu0 0.0
    %375 = vmatprep.subr.mxu0 0.0
    %376 = vmatpush1.msra.mxu0 0.0
    %377 = vmatprep.subr.mxu0 0.0
    %378 = vmatpush1.msra.mxu0 0.0
    %379 = vmatprep.subr.mxu0 0.0
    %380 = vmatpush1.msra.mxu0 0.0
    %381 = vmatprep.subr.mxu0 0.0
    %382 = vmatpush1.msra.mxu0 0.0
    %383 = vmatprep.subr.mxu0 0.0
    %384 = vmatpush1.msra.mxu0 0.0
    %385 = vmatprep.subr.mxu0 0.0
    %386 = vmatpush1.msra.mxu0 0.0
    %387 = vmatprep.subr.mxu0 0.0
    %388 = vmatpush1.msra.mxu0 0.0
    %389 = vmatprep.subr.mxu0 0.0
    %390 = vmatpush1.msra.mxu0 0.0
    %391 = vmatprep.subr.mxu0 0.0
    %392 = vmatpush1.msra.mxu0 0.0
    %393 = vmatprep.mubr.f32.mxu0 0.0
    %394 = vmatmul.mubr.f32.gmra.mrb[0].mxu0 %v308
    %v395 = vpop.f32.mrb[0].mxu0
    %v396 = vadd.f32 0.0, %v395
    %v397 = vpop.f32.mrb[0].mxu0
    %398 = vmatprep.mubr.f32.mxu0 0.0
    %399 = vmatmul.mubr.f32.gmra.mrb[0].mxu0 %v309
    %v400 = vpop.f32.mrb[0].mxu0
    %v401 = vadd.f32 0.0, %v400
    %v402 = vpop.f32.mrb[0].mxu0
    %403 = vmatprep.mubr.f32.mxu0 0.0
    %404 = vmatmul.mubr.f32.gmra.mrb[0].mxu0 %v310
    %v405 = vpop.f32.mrb[0].mxu0
    %v406 = vadd.f32 0.0, %v405
    %v407 = vpop.f32.mrb[0].mxu0
    %408 = vmatprep.mubr.f32.mxu0 0.0
    %409 = vmatmul.mubr.f32.gmra.mrb[0].mxu0 %v311
    %v410 = vpop.f32.mrb[0].mxu0
    %v411 = vadd.f32 0.0, %v410
    %v412 = vpop.f32.mrb[0].mxu0
    %413 = vdwg.mxu0
    %v414 = vadd.f32 %v290, %v396
    %v415 = vadd.f32 %v295, %v401
    %v416 = vadd.f32 %v300, %v406
    %v417 = vadd.f32 %v305, %v411
    %v418 = vld [vmem:[%s4] sm:$0x1]
    %v419 = vld [vmem:[%s5] sm:$0x1]
    %vm420 = vcmask 261120
    %v422 = vsel %vm420, 1.0, 0
    %424 = vmatprep.subr.mxu0 0.0
    %425 = vmatpush1.msra.mxu0 %v414
    %426 = vmatprep.subr.mxu0 0.0
    %427 = vmatpush1.msra.mxu0 %v415
    %428 = vmatprep.subr.mxu0 0.0
    %429 = vmatpush1.msra.mxu0 %v416
    %430 = vmatprep.subr.mxu0 0.0
    %431 = vmatpush1.msra.mxu0 %v417
    %432 = vmatprep.subr.mxu0 0.0
    %433 = vmatpush1.msra.mxu0 0.0
    %434 = vmatprep.subr.mxu0 0.0
    %435 = vmatpush1.msra.mxu0 0.0
    %436 = vmatprep.subr.mxu0 0.0
    %437 = vmatpush1.msra.mxu0 0.0
    %438 = vmatprep.subr.mxu0 0.0
    %439 = vmatpush1.msra.mxu0 0.0
    %440 = vmatprep.subr.mxu0 0.0
    %441 = vmatpush1.msra.mxu0 0.0
    %442 = vmatprep.subr.mxu0 0.0
    %443 = vmatpush1.msra.mxu0 0.0
    %444 = vmatprep.subr.mxu0 0.0
    %445 = vmatpush1.msra.mxu0 0.0
    %446 = vmatprep.subr.mxu0 0.0
    %447 = vmatpush1.msra.mxu0 0.0
    %448 = vmatprep.subr.mxu0 0.0
    %449 = vmatpush1.msra.mxu0 0.0
    %450 = vmatprep.subr.mxu0 0.0
    %451 = vmatpush1.msra.mxu0 0.0
    %452 = vmatprep.subr.mxu0 0.0
    %453 = vmatpush1.msra.mxu0 0.0
    %454 = vmatprep.subr.mxu0 0.0
    %455 = vmatpush1.msra.mxu0 0.0
    %456 = vmatprep.subr.mxu0 0.0
    %457 = vmatpush1.msra.mxu0 0.0
    %458 = vmatprep.subr.mxu0 0.0
    %459 = vmatpush1.msra.mxu0 0.0
    %460 = vmatprep.subr.mxu0 0.0
    %461 = vmatpush1.msra.mxu0 0.0
    %462 = vmatprep.subr.mxu0 0.0
    %463 = vmatpush1.msra.mxu0 0.0
    %464 = vmatprep.subr.mxu0 0.0
    %465 = vmatpush1.msra.mxu0 0.0
    %466 = vmatprep.subr.mxu0 0.0
    %467 = vmatpush1.msra.mxu0 0.0
    %468 = vmatprep.subr.mxu0 0.0
    %469 = vmatpush1.msra.mxu0 0.0
    %470 = vmatprep.subr.mxu0 0.0
    %471 = vmatpush1.msra.mxu0 0.0
    %472 = vmatprep.subr.mxu0 0.0
    %473 = vmatpush1.msra.mxu0 0.0
    %474 = vmatprep.subr.mxu0 0.0
    %475 = vmatpush1.msra.mxu0 0.0
    %476 = vmatprep.subr.mxu0 0.0
    %477 = vmatpush1.msra.mxu0 0.0
    %478 = vmatprep.subr.mxu0 0.0
    %479 = vmatpush1.msra.mxu0 0.0
    %480 = vmatprep.subr.mxu0 0.0
    %481 = vmatpush1.msra.mxu0 0.0
    %482 = vmatprep.subr.mxu0 0.0
    %483 = vmatpush1.msra.mxu0 0.0
    %484 = vmatprep.subr.mxu0 0.0
    %485 = vmatpush1.msra.mxu0 0.0
    %486 = vmatprep.subr.mxu0 0.0
    %487 = vmatpush1.msra.mxu0 0.0
    %488 = vmatprep.mubr.f32.mxu0 0.0
    %489 = vmatmul.mubr.f32.gmra.mrb[0].mxu0 %v422
    %v490 = vpop.f32.mrb[0].mxu0
    %v491 = vadd.f32 0.0, %v490
    %v492 = vpop.f32.mrb[0].mxu0
    %493 = vdwg.mxu0
    %v494 = vld [vmem:[#allocation9] sm:$0xff]
    %v495 = vld [vmem:[#allocation9 + $0x8] sm:$0xff]
    %v496 = vld [vmem:[#allocation9 + $0x10] sm:$0xff]
    %v497 = vld [vmem:[#allocation9 + $0x18] sm:$0xff]
    %v498 = vld [vmem:[#allocation9 + $0x20] sm:$0xff]
    %v499 = vld [vmem:[#allocation9 + $0x28] sm:$0xff]
    %v500 = vld [vmem:[#allocation9 + $0x30] sm:$0xff]
    %v501 = vld [vmem:[#allocation9 + $0x38] sm:$0xff]
    %v502 = vld [vmem:[#allocation9 + $0x40] sm:$0xff]
    %v503 = vld [vmem:[#allocation9 + $0x48] sm:$0xff]
    %v504 = vld [vmem:[#allocation9 + $0x50] sm:$0xff]
    %v505 = vld [vmem:[#allocation9 + $0x58] sm:$0xff]
    %v506 = vld [vmem:[#allocation9 + $0x60] sm:$0xff]
    %v507 = vld [vmem:[#allocation9 + $0x68] sm:$0xff]
    %v508 = vld [vmem:[#allocation9 + $0x70] sm:$0xff]
    %v509 = vld [vmem:[#allocation9 + $0x78] sm:$0xff]
    %510 = vmatprep.subr.mxu0 0.0
    %511 = vmatpush1.msra.mxu0 %v494
    %512 = vmatprep.subr.mxu0 0.0
    %513 = vmatpush1.msra.mxu0 %v495
    %514 = vmatprep.subr.mxu0 0.0
    %515 = vmatpush1.msra.mxu0 %v496
    %516 = vmatprep.subr.mxu0 0.0
    %517 = vmatpush1.msra.mxu0 %v497
    %518 = vmatprep.subr.mxu0 0.0
    %519 = vmatpush1.msra.mxu0 %v498
    %520 = vmatprep.subr.mxu0 0.0
    %521 = vmatpush1.msra.mxu0 %v499
    %522 = vmatprep.subr.mxu0 0.0
    %523 = vmatpush1.msra.mxu0 %v500
    %524 = vmatprep.subr.mxu0 0.0
    %525 = vmatpush1.msra.mxu0 %v501
    %526 = vmatprep.subr.mxu0 0.0
    %527 = vmatpush1.msra.mxu0 %v502
    %528 = vmatprep.subr.mxu0 0.0
    %529 = vmatpush1.msra.mxu0 %v503
    %530 = vmatprep.subr.mxu0 0.0
    %531 = vmatpush1.msra.mxu0 %v504
    %532 = vmatprep.subr.mxu0 0.0
    %533 = vmatpush1.msra.mxu0 %v505
    %534 = vmatprep.subr.mxu0 0.0
    %535 = vmatpush1.msra.mxu0 %v506
    %536 = vmatprep.subr.mxu0 0.0
    %537 = vmatpush1.msra.mxu0 %v507
    %538 = vmatprep.subr.mxu0 0.0
    %539 = vmatpush1.msra.mxu0 %v508
    %540 = vmatprep.subr.mxu0 0.0
    %541 = vmatpush1.msra.mxu0 %v509
    %542 = vmatprep.subr.mxu0 0.0
    %543 = vmatpush1.msra.mxu0 0.0
    %544 = vmatprep.subr.mxu0 0.0
    %545 = vmatpush1.msra.mxu0 0.0
    %546 = vmatprep.subr.mxu0 0.0
    %547 = vmatpush1.msra.mxu0 0.0
    %548 = vmatprep.subr.mxu0 0.0
    %549 = vmatpush1.msra.mxu0 0.0
    %550 = vmatprep.subr.mxu0 0.0
    %551 = vmatpush1.msra.mxu0 0.0
    %552 = vmatprep.subr.mxu0 0.0
    %553 = vmatpush1.msra.mxu0 0.0
    %554 = vmatprep.subr.mxu0 0.0
    %555 = vmatpush1.msra.mxu0 0.0
    %556 = vmatprep.subr.mxu0 0.0
    %557 = vmatpush1.msra.mxu0 0.0
    %558 = vmatprep.subr.mxu0 0.0
    %559 = vmatpush1.msra.mxu0 0.0
    %560 = vmatprep.subr.mxu0 0.0
    %561 = vmatpush1.msra.mxu0 0.0
    %562 = vmatprep.subr.mxu0 0.0
    %563 = vmatpush1.msra.mxu0 0.0
    %564 = vmatprep.subr.mxu0 0.0
    %565 = vmatpush1.msra.mxu0 0.0
    %566 = vmatprep.subr.mxu0 0.0
    %567 = vmatpush1.msra.mxu0 0.0
    %568 = vmatprep.subr.mxu0 0.0
    %569 = vmatpush1.msra.mxu0 0.0
    %570 = vmatprep.subr.mxu0 0.0
    %571 = vmatpush1.msra.mxu0 0.0
    %572 = vmatprep.subr.mxu0 0.0
    %573 = vmatpush1.msra.mxu0 0.0
    %574 = vmatprep.mubr.f32.mxu0 0.0
    %575 = vmatmul.mubr.f32.gmra.mrb[0].mxu0 %v491
    %v576 = vpop.f32.mrb[0].mxu0
    %v577 = vadd.f32 0.0, %v576
    %v578 = vpop.f32.mrb[0].mxu0
    %579 = vdwg.mxu0
    %v580 = vlaneseq
    %v581 = vshrl.u32 %v580, 7
    %v582 = vsub.s32 0, %v581
    %v583 = vrot.slane %v577, %v582
    %v584 = vsub.f32 %v414, %v583
    %v585 = vsub.f32 %v415, %v583
    %v586 = vsub.f32 %v416, %v583
    %v587 = vsub.f32 %v417, %v583
    %v588 = vmul.f32 %v584, %v584
    %v589 = vmul.f32 %v585, %v585
    %v590 = vmul.f32 %v586, %v586
    %v591 = vmul.f32 %v587, %v587
    %592 = vmatprep.subr.mxu0 0.0
    %593 = vmatpush1.msra.mxu0 %v588
    %594 = vmatprep.subr.mxu0 0.0
    %595 = vmatpush1.msra.mxu0 %v589
    %596 = vmatprep.subr.mxu0 0.0
    %597 = vmatpush1.msra.mxu0 %v590
    %598 = vmatprep.subr.mxu0 0.0
    %599 = vmatpush1.msra.mxu0 %v591
    %600 = vmatprep.subr.mxu0 0.0
    %601 = vmatpush1.msra.mxu0 0.0
    %602 = vmatprep.subr.mxu0 0.0
    %603 = vmatpush1.msra.mxu0 0.0
    %604 = vmatprep.subr.mxu0 0.0
    %605 = vmatpush1.msra.mxu0 0.0
    %606 = vmatprep.subr.mxu0 0.0
    %607 = vmatpush1.msra.mxu0 0.0
    %608 = vmatprep.subr.mxu0 0.0
    %609 = vmatpush1.msra.mxu0 0.0
    %610 = vmatprep.subr.mxu0 0.0
    %611 = vmatpush1.msra.mxu0 0.0
    %612 = vmatprep.subr.mxu0 0.0
    %613 = vmatpush1.msra.mxu0 0.0
    %614 = vmatprep.subr.mxu0 0.0
    %615 = vmatpush1.msra.mxu0 0.0
    %616 = vmatprep.subr.mxu0 0.0
    %617 = vmatpush1.msra.mxu0 0.0
    %618 = vmatprep.subr.mxu0 0.0
    %619 = vmatpush1.msra.mxu0 0.0
    %620 = vmatprep.subr.mxu0 0.0
    %621 = vmatpush1.msra.mxu0 0.0
    %622 = vmatprep.subr.mxu0 0.0
    %623 = vmatpush1.msra.mxu0 0.0
    %624 = vmatprep.subr.mxu0 0.0
    %625 = vmatpush1.msra.mxu0 0.0
    %626 = vmatprep.subr.mxu0 0.0
    %627 = vmatpush1.msra.mxu0 0.0
    %628 = vmatprep.subr.mxu0 0.0
    %629 = vmatpush1.msra.mxu0 0.0
    %630 = vmatprep.subr.mxu0 0.0
    %631 = vmatpush1.msra.mxu0 0.0
    %632 = vmatprep.subr.mxu0 0.0
    %633 = vmatpush1.msra.mxu0 0.0
    %634 = vmatprep.subr.mxu0 0.0
    %635 = vmatpush1.msra.mxu0 0.0
    %636 = vmatprep.subr.mxu0 0.0
    %637 = vmatpush1.msra.mxu0 0.0
    %638 = vmatprep.subr.mxu0 0.0
    %639 = vmatpush1.msra.mxu0 0.0
    %640 = vmatprep.subr.mxu0 0.0
    %641 = vmatpush1.msra.mxu0 0.0
    %642 = vmatprep.subr.mxu0 0.0
    %643 = vmatpush1.msra.mxu0 0.0
    %644 = vmatprep.subr.mxu0 0.0
    %645 = vmatpush1.msra.mxu0 0.0
    %646 = vmatprep.subr.mxu0 0.0
    %647 = vmatpush1.msra.mxu0 0.0
    %648 = vmatprep.subr.mxu0 0.0
    %649 = vmatpush1.msra.mxu0 0.0
    %650 = vmatprep.subr.mxu0 0.0
    %651 = vmatpush1.msra.mxu0 0.0
    %652 = vmatprep.subr.mxu0 0.0
    %653 = vmatpush1.msra.mxu0 0.0
    %654 = vmatprep.subr.mxu0 0.0
    %655 = vmatpush1.msra.mxu0 0.0
    %656 = vmatprep.mubr.f32.mxu0 0.0
    %657 = vmatmul.mubr.f32.gmra.mrb[0].mxu0 %v422
    %v658 = vpop.f32.mrb[0].mxu0
    %v659 = vadd.f32 0.0, %v658
    %v660 = vpop.f32.mrb[0].mxu0
    %661 = vdwg.mxu0
    %662 = vmatprep.subr.mxu0 0.0
    %663 = vmatpush1.msra.mxu0 %v494
    %664 = vmatprep.subr.mxu0 0.0
    %665 = vmatpush1.msra.mxu0 %v495
    %666 = vmatprep.subr.mxu0 0.0
    %667 = vmatpush1.msra.mxu0 %v496
    %668 = vmatprep.subr.mxu0 0.0
    %669 = vmatpush1.msra.mxu0 %v497
    %670 = vmatprep.subr.mxu0 0.0
    %671 = vmatpush1.msra.mxu0 %v498
    %672 = vmatprep.subr.mxu0 0.0
    %673 = vmatpush1.msra.mxu0 %v499
    %674 = vmatprep.subr.mxu0 0.0
    %675 = vmatpush1.msra.mxu0 %v500
    %676 = vmatprep.subr.mxu0 0.0
    %677 = vmatpush1.msra.mxu0 %v501
    %678 = vmatprep.subr.mxu0 0.0
    %679 = vmatpush1.msra.mxu0 %v502
    %680 = vmatprep.subr.mxu0 0.0
    %681 = vmatpush1.msra.mxu0 %v503
    %682 = vmatprep.subr.mxu0 0.0
    %683 = vmatpush1.msra.mxu0 %v504
    %684 = vmatprep.subr.mxu0 0.0
    %685 = vmatpush1.msra.mxu0 %v505
    %686 = vmatprep.subr.mxu0 0.0
    %687 = vmatpush1.msra.mxu0 %v506
    %688 = vmatprep.subr.mxu0 0.0
    %689 = vmatpush1.msra.mxu0 %v507
    %690 = vmatprep.subr.mxu0 0.0
    %691 = vmatpush1.msra.mxu0 %v508
    %692 = vmatprep.subr.mxu0 0.0
    %693 = vmatpush1.msra.mxu0 %v509
    %694 = vmatprep.subr.mxu0 0.0
    %695 = vmatpush1.msra.mxu0 0.0
    %696 = vmatprep.subr.mxu0 0.0
    %697 = vmatpush1.msra.mxu0 0.0
    %698 = vmatprep.subr.mxu0 0.0
    %699 = vmatpush1.msra.mxu0 0.0
    %700 = vmatprep.subr.mxu0 0.0
    %701 = vmatpush1.msra.mxu0 0.0
    %702 = vmatprep.subr.mxu0 0.0
    %703 = vmatpush1.msra.mxu0 0.0
    %704 = vmatprep.subr.mxu0 0.0
    %705 = vmatpush1.msra.mxu0 0.0
    %706 = vmatprep.subr.mxu0 0.0
    %707 = vmatpush1.msra.mxu0 0.0
    %708 = vmatprep.subr.mxu0 0.0
    %709 = vmatpush1.msra.mxu0 0.0
    %710 = vmatprep.subr.mxu0 0.0
    %711 = vmatpush1.msra.mxu0 0.0
    %712 = vmatprep.subr.mxu0 0.0
    %713 = vmatpush1.msra.mxu0 0.0
    %714 = vmatprep.subr.mxu0 0.0
    %715 = vmatpush1.msra.mxu0 0.0
    %716 = vmatprep.subr.mxu0 0.0
    %717 = vmatpush1.msra.mxu0 0.0
    %718 = vmatprep.subr.mxu0 0.0
    %719 = vmatpush1.msra.mxu0 0.0
    %720 = vmatprep.subr.mxu0 0.0
    %721 = vmatpush1.msra.mxu0 0.0
    %722 = vmatprep.subr.mxu0 0.0
    %723 = vmatpush1.msra.mxu0 0.0
    %724 = vmatprep.subr.mxu0 0.0
    %725 = vmatpush1.msra.mxu0 0.0
    %726 = vmatprep.mubr.f32.mxu0 0.0
    %727 = vmatmul.mubr.f32.gmra.mrb[0].mxu0 %v659
    %v728 = vpop.f32.mrb[0].mxu0
    %v729 = vadd.f32 1e-05, %v728
    %v730 = vpop.f32.mrb[0].mxu0
    %731 = vdwg.mxu0
    %v732 = vrsqrt.pop %v729
    %v733 = vmul.f32 %v732, %v418
    %v734 = vlaneseq
    %v735 = vshrl.u32 %v734, 7
    %v736 = vsub.s32 0, %v735
    %v737 = vrot.slane %v733, %v736
    %v738 = vmul.f32 %v584, %v737
    %v739 = vmul.f32 %v585, %v737
    %v740 = vmul.f32 %v586, %v737
    %v741 = vmul.f32 %v587, %v737
    %v743 = vlaneseq
    %v744 = vshrl.u32 %v743, 7
    %v745 = vsub.s32 0, %v744
    %v746 = vrot.slane %v419, %v745
    %v748 = vadd.f32 %v738, %v746
    %v749 = vadd.f32 %v739, %v746
    %v750 = vadd.f32 %v740, %v746
    %v751 = vadd.f32 %v741, %v746
    %v752 = vmax.f32 %v748, 0.0
    %v753 = vmax.f32 %v749, 0.0
    %v754 = vmax.f32 %v750, 0.0
    %v755 = vmax.f32 %v751, 0.0
    %756 = vst [vmem:[#allocation2 + $0x8] sm:$0xff] %v752
    %757 = vst [vmem:[#allocation2 + $0x10] sm:$0xff] %v753
    %758 = vst [vmem:[#allocation2 + $0x28] sm:$0xff] %v754
    %759 = vst [vmem:[#allocation2 + $0x30] sm:$0xff] %v755
    %v760 = vld [vmem:[#allocation2 + $0x7] sm:$0xff]
    %v761 = vld [vmem:[#allocation2 + $0xf] sm:$0xff]
    %v762 = vld [vmem:[#allocation2 + $0x27] sm:$0xff]
    %v763 = vld [vmem:[#allocation2 + $0x2f] sm:$0xff]
    %v764 = vld [vmem:[#allocation8] sm:$0xff]
    %v765 = vld [vmem:[#allocation8 + $0x8] sm:$0xff]
    %v766 = vld [vmem:[#allocation8 + $0x10] sm:$0xff]
    %v767 = vld [vmem:[#allocation8 + $0x18] sm:$0xff]
    %v768 = vld [vmem:[#allocation8 + $0x20] sm:$0xff]
    %v769 = vld [vmem:[#allocation8 + $0x28] sm:$0xff]
    %v770 = vld [vmem:[#allocation8 + $0x30] sm:$0xff]
    %v771 = vld [vmem:[#allocation8 + $0x38] sm:$0xff]
    %v772 = vld [vmem:[#allocation8 + $0x40] sm:$0xff]
    %v773 = vld [vmem:[#allocation8 + $0x48] sm:$0xff]
    %v774 = vld [vmem:[#allocation8 + $0x50] sm:$0xff]
    %v775 = vld [vmem:[#allocation8 + $0x58] sm:$0xff]
    %v776 = vld [vmem:[#allocation8 + $0x60] sm:$0xff]
    %v777 = vld [vmem:[#allocation8 + $0x68] sm:$0xff]
    %v778 = vld [vmem:[#allocation8 + $0x70] sm:$0xff]
    %v779 = vld [vmem:[#allocation8 + $0x78] sm:$0xff]
    %v780 = vld [vmem:[#allocation2 + $0x8] sm:$0xff]
    %v781 = vld [vmem:[#allocation2 + $0x10] sm:$0xff]
    %v782 = vld [vmem:[#allocation2 + $0x28] sm:$0xff]
    %v783 = vld [vmem:[#allocation2 + $0x30] sm:$0xff]
    %s784 = scalar_lea.vmem [#allocation8], 128
    %v785 = vld [vmem:[%s784] sm:$0xff]
    %v786 = vld [vmem:[%s784 + $0x8] sm:$0xff]
    %v787 = vld [vmem:[%s784 + $0x10] sm:$0xff]
    %v788 = vld [vmem:[%s784 + $0x18] sm:$0xff]
    %v789 = vld [vmem:[%s784 + $0x20] sm:$0xff]
    %v790 = vld [vmem:[%s784 + $0x28] sm:$0xff]
    %v791 = vld [vmem:[%s784 + $0x30] sm:$0xff]
    %v792 = vld [vmem:[%s784 + $0x38] sm:$0xff]
    %v793 = vld [vmem:[%s784 + $0x40] sm:$0xff]
    %v794 = vld [vmem:[%s784 + $0x48] sm:$0xff]
    %v795 = vld [vmem:[%s784 + $0x50] sm:$0xff]
    %v796 = vld [vmem:[%s784 + $0x58] sm:$0xff]
    %v797 = vld [vmem:[%s784 + $0x60] sm:$0xff]
    %v798 = vld [vmem:[%s784 + $0x68] sm:$0xff]
    %v799 = vld [vmem:[%s784 + $0x70] sm:$0xff]
    %v800 = vld [vmem:[%s784 + $0x78] sm:$0xff]
    %801 = vmatprep.subr.mxu0 0.0
    %802 = vmatpush1.msra.mxu0 %v785
    %803 = vmatprep.subr.mxu0 0.0
    %804 = vmatpush1.msra.mxu0 %v786
    %805 = vmatprep.subr.mxu0 0.0
    %806 = vmatpush1.msra.mxu0 %v787
    %807 = vmatprep.subr.mxu0 0.0
    %808 = vmatpush1.msra.mxu0 %v788
    %809 = vmatprep.subr.mxu0 0.0
    %810 = vmatpush1.msra.mxu0 %v789
    %811 = vmatprep.subr.mxu0 0.0
    %812 = vmatpush1.msra.mxu0 %v790
    %813 = vmatprep.subr.mxu0 0.0
    %814 = vmatpush1.msra.mxu0 %v791
    %815 = vmatprep.subr.mxu0 0.0
    %816 = vmatpush1.msra.mxu0 %v792
    %817 = vmatprep.subr.mxu0 0.0
    %818 = vmatpush1.msra.mxu0 %v793
    %819 = vmatprep.subr.mxu0 0.0
    %820 = vmatpush1.msra.mxu0 %v794
    %821 = vmatprep.subr.mxu0 0.0
    %822 = vmatpush1.msra.mxu0 %v795
    %823 = vmatprep.subr.mxu0 0.0
    %824 = vmatpush1.msra.mxu0 %v796
    %825 = vmatprep.subr.mxu0 0.0
    %826 = vmatpush1.msra.mxu0 %v797
    %827 = vmatprep.subr.mxu0 0.0
    %828 = vmatpush1.msra.mxu0 %v798
    %829 = vmatprep.subr.mxu0 0.0
    %830 = vmatpush1.msra.mxu0 %v799
    %831 = vmatprep.subr.mxu0 0.0
    %832 = vmatpush1.msra.mxu0 %v800
    %833 = vmatprep.subr.mxu0 0.0
    %834 = vmatpush1.msra.mxu0 0.0
    %835 = vmatprep.subr.mxu0 0.0
    %836 = vmatpush1.msra.mxu0 0.0
    %837 = vmatprep.subr.mxu0 0.0
    %838 = vmatpush1.msra.mxu0 0.0
    %839 = vmatprep.subr.mxu0 0.0
    %840 = vmatpush1.msra.mxu0 0.0
    %841 = vmatprep.subr.mxu0 0.0
    %842 = vmatpush1.msra.mxu0 0.0
    %843 = vmatprep.subr.mxu0 0.0
    %844 = vmatpush1.msra.mxu0 0.0
    %845 = vmatprep.subr.mxu0 0.0
    %846 = vmatpush1.msra.mxu0 0.0
    %847 = vmatprep.subr.mxu0 0.0
    %848 = vmatpush1.msra.mxu0 0.0
    %849 = vmatprep.subr.mxu0 0.0
    %850 = vmatpush1.msra.mxu0 0.0
    %851 = vmatprep.subr.mxu0 0.0
    %852 = vmatpush1.msra.mxu0 0.0
    %853 = vmatprep.subr.mxu0 0.0
    %854 = vmatpush1.msra.mxu0 0.0
    %855 = vmatprep.subr.mxu0 0.0
    %856 = vmatpush1.msra.mxu0 0.0
    %857 = vmatprep.subr.mxu0 0.0
    %858 = vmatpush1.msra.mxu0 0.0
    %859 = vmatprep.subr.mxu0 0.0
    %860 = vmatpush1.msra.mxu0 0.0
    %861 = vmatprep.subr.mxu0 0.0
    %862 = vmatpush1.msra.mxu0 0.0
    %863 = vmatprep.subr.mxu0 0.0
    %864 = vmatpush1.msra.mxu0 0.0
    %865 = vmatprep.mubr.f32.mxu0 0.0
    %866 = vmatmul.mubr.f32.gmra.mrb[0].mxu0 %v780
    %v867 = vpop.f32.mrb[0].mxu0
    %v868 = vadd.f32 0.0, %v867
    %v869 = vpop.f32.mrb[0].mxu0
    %870 = vmatprep.mubr.f32.mxu0 0.0
    %871 = vmatmul.mubr.f32.gmra.mrb[0].mxu0 %v781
    %v872 = vpop.f32.mrb[0].mxu0
    %v873 = vadd.f32 0.0, %v872
    %v874 = vpop.f32.mrb[0].mxu0
    %875 = vmatprep.mubr.f32.mxu0 0.0
    %876 = vmatmul.mubr.f32.gmra.mrb[0].mxu0 %v782
    %v877 = vpop.f32.mrb[0].mxu0
    %v878 = vadd.f32 0.0, %v877
    %v879 = vpop.f32.mrb[0].mxu0
    %880 = vmatprep.mubr.f32.mxu0 0.0
    %881 = vmatmul.mubr.f32.gmra.mrb[0].mxu0 %v783
    %v882 = vpop.f32.mrb[0].mxu0
    %v883 = vadd.f32 0.0, %v882
    %v884 = vpop.f32.mrb[0].mxu0
    %885 = vdwg.mxu0
    %886 = vmatprep.subr.mxu0 0.0
    %887 = vmatpush1.msra.mxu0 %v764
    %888 = vmatprep.subr.mxu0 0.0
    %889 = vmatpush1.msra.mxu0 %v765
    %890 = vmatprep.subr.mxu0 0.0
    %891 = vmatpush1.msra.mxu0 %v766
    %892 = vmatprep.subr.mxu0 0.0
    %893 = vmatpush1.msra.mxu0 %v767
    %894 = vmatprep.subr.mxu0 0.0
    %895 = vmatpush1.msra.mxu0 %v768
    %896 = vmatprep.subr.mxu0 0.0
    %897 = vmatpush1.msra.mxu0 %v769
    %898 = vmatprep.subr.mxu0 0.0
    %899 = vmatpush1.msra.mxu0 %v770
    %900 = vmatprep.subr.mxu0 0.0
    %901 = vmatpush1.msra.mxu0 %v771
    %902 = vmatprep.subr.mxu0 0.0
    %903 = vmatpush1.msra.mxu0 %v772
    %904 = vmatprep.subr.mxu0 0.0
    %905 = vmatpush1.msra.mxu0 %v773
    %906 = vmatprep.subr.mxu0 0.0
    %907 = vmatpush1.msra.mxu0 %v774
    %908 = vmatprep.subr.mxu0 0.0
    %909 = vmatpush1.msra.mxu0 %v775
    %910 = vmatprep.subr.mxu0 0.0
    %911 = vmatpush1.msra.mxu0 %v776
    %912 = vmatprep.subr.mxu0 0.0
    %913 = vmatpush1.msra.mxu0 %v777
    %914 = vmatprep.subr.mxu0 0.0
    %915 = vmatpush1.msra.mxu0 %v778
    %916 = vmatprep.subr.mxu0 0.0
    %917 = vmatpush1.msra.mxu0 %v779
    %918 = vmatprep.subr.mxu0 0.0
    %919 = vmatpush1.msra.mxu0 0.0
    %920 = vmatprep.subr.mxu0 0.0
    %921 = vmatpush1.msra.mxu0 0.0
    %922 = vmatprep.subr.mxu0 0.0
    %923 = vmatpush1.msra.mxu0 0.0
    %924 = vmatprep.subr.mxu0 0.0
    %925 = vmatpush1.msra.mxu0 0.0
    %926 = vmatprep.subr.mxu0 0.0
    %927 = vmatpush1.msra.mxu0 0.0
    %928 = vmatprep.subr.mxu0 0.0
    %929 = vmatpush1.msra.mxu0 0.0
    %930 = vmatprep.subr.mxu0 0.0
    %931 = vmatpush1.msra.mxu0 0.0
    %932 = vmatprep.subr.mxu0 0.0
    %933 = vmatpush1.msra.mxu0 0.0
    %934 = vmatprep.subr.mxu0 0.0
    %935 = vmatpush1.msra.mxu0 0.0
    %936 = vmatprep.subr.mxu0 0.0
    %937 = vmatpush1.msra.mxu0 0.0
    %938 = vmatprep.subr.mxu0 0.0
    %939 = vmatpush1.msra.mxu0 0.0
    %940 = vmatprep.subr.mxu0 0.0
    %941 = vmatpush1.msra.mxu0 0.0
    %942 = vmatprep.subr.mxu0 0.0
    %943 = vmatpush1.msra.mxu0 0.0
    %944 = vmatprep.subr.mxu0 0.0
    %945 = vmatpush1.msra.mxu0 0.0
    %946 = vmatprep.subr.mxu0 0.0
    %947 = vmatpush1.msra.mxu0 0.0
    %948 = vmatprep.subr.mxu0 0.0
    %949 = vmatpush1.msra.mxu0 0.0
    %950 = vmatprep.mubr.f32.mxu0 0.0
    %951 = vmatmul.mubr.f32.gmra.mrb[0].mxu0 %v760
    %v952 = vpop.f32.mrb[0].mxu0
    %v953 = vadd.f32 %v868, %v952
    %v954 = vpop.f32.mrb[0].mxu0
    %955 = vmatprep.mubr.f32.mxu0 0.0
    %956 = vmatmul.mubr.f32.gmra.mrb[0].mxu0 %v761
    %v957 = vpop.f32.mrb[0].mxu0
    %v958 = vadd.f32 %v873, %v957
    %v959 = vpop.f32.mrb[0].mxu0
    %960 = vmatprep.mubr.f32.mxu0 0.0
    %961 = vmatmul.mubr.f32.gmra.mrb[0].mxu0 %v762
    %v962 = vpop.f32.mrb[0].mxu0
    %v963 = vadd.f32 %v878, %v962
    %v964 = vpop.f32.mrb[0].mxu0
    %965 = vmatprep.mubr.f32.mxu0 0.0
    %966 = vmatmul.mubr.f32.gmra.mrb[0].mxu0 %v763
    %v967 = vpop.f32.mrb[0].mxu0
    %v968 = vadd.f32 %v883, %v967
    %v969 = vpop.f32.mrb[0].mxu0
    %970 = vdwg.mxu0
    %v971 = vld [vmem:[#allocation2 + $0x9] sm:$0xff]
    %v972 = vld [vmem:[#allocation2 + $0x11] sm:$0xff]
    %v973 = vld [vmem:[#allocation2 + $0x29] sm:$0xff]
    %v974 = vld [vmem:[#allocation2 + $0x31] sm:$0xff]
    %s975 = scalar_lea.vmem [#allocation8], 256
    %v976 = vld [vmem:[%s975] sm:$0xff]
    %v977 = vld [vmem:[%s975 + $0x8] sm:$0xff]
    %v978 = vld [vmem:[%s975 + $0x10] sm:$0xff]
    %v979 = vld [vmem:[%s975 + $0x18] sm:$0xff]
    %v980 = vld [vmem:[%s975 + $0x20] sm:$0xff]
    %v981 = vld [vmem:[%s975 + $0x28] sm:$0xff]
    %v982 = vld [vmem:[%s975 + $0x30] sm:$0xff]
    %v983 = vld [vmem:[%s975 + $0x38] sm:$0xff]
    %v984 = vld [vmem:[%s975 + $0x40] sm:$0xff]
    %v985 = vld [vmem:[%s975 + $0x48] sm:$0xff]
    %v986 = vld [vmem:[%s975 + $0x50] sm:$0xff]
    %v987 = vld [vmem:[%s975 + $0x58] sm:$0xff]
    %v988 = vld [vmem:[%s975 + $0x60] sm:$0xff]
    %v989 = vld [vmem:[%s975 + $0x68] sm:$0xff]
    %v990 = vld [vmem:[%s975 + $0x70] sm:$0xff]
    %v991 = vld [vmem:[%s975 + $0x78] sm:$0xff]
    %992 = vmatprep.subr.mxu0 0.0
    %993 = vmatpush1.msra.mxu0 %v976
    %994 = vmatprep.subr.mxu0 0.0
    %995 = vmatpush1.msra.mxu0 %v977
    %996 = vmatprep.subr.mxu0 0.0
    %997 = vmatpush1.msra.mxu0 %v978
    %998 = vmatprep.subr.mxu0 0.0
    %999 = vmatpush1.msra.mxu0 %v979
    %1000 = vmatprep.subr.mxu0 0.0
    %1001 = vmatpush1.msra.mxu0 %v980
    %1002 = vmatprep.subr.mxu0 0.0
    %1003 = vmatpush1.msra.mxu0 %v981
    %1004 = vmatprep.subr.mxu0 0.0
    %1005 = vmatpush1.msra.mxu0 %v982
    %1006 = vmatprep.subr.mxu0 0.0
    %1007 = vmatpush1.msra.mxu0 %v983
    %1008 = vmatprep.subr.mxu0 0.0
    %1009 = vmatpush1.msra.mxu0 %v984
    %1010 = vmatprep.subr.mxu0 0.0
    %1011 = vmatpush1.msra.mxu0 %v985
    %1012 = vmatprep.subr.mxu0 0.0
    %1013 = vmatpush1.msra.mxu0 %v986
    %1014 = vmatprep.subr.mxu0 0.0
    %1015 = vmatpush1.msra.mxu0 %v987
    %1016 = vmatprep.subr.mxu0 0.0
    %1017 = vmatpush1.msra.mxu0 %v988
    %1018 = vmatprep.subr.mxu0 0.0
    %1019 = vmatpush1.msra.mxu0 %v989
    %1020 = vmatprep.subr.mxu0 0.0
    %1021 = vmatpush1.msra.mxu0 %v990
    %1022 = vmatprep.subr.mxu0 0.0
    %1023 = vmatpush1.msra.mxu0 %v991
    %1024 = vmatprep.subr.mxu0 0.0
    %1025 = vmatpush1.msra.mxu0 0.0
    %1026 = vmatprep.subr.mxu0 0.0
    %1027 = vmatpush1.msra.mxu0 0.0
    %1028 = vmatprep.subr.mxu0 0.0
    %1029 = vmatpush1.msra.mxu0 0.0
    %1030 = vmatprep.subr.mxu0 0.0
    %1031 = vmatpush1.msra.mxu0 0.0
    %1032 = vmatprep.subr.mxu0 0.0
    %1033 = vmatpush1.msra.mxu0 0.0
    %1034 = vmatprep.subr.mxu0 0.0
    %1035 = vmatpush1.msra.mxu0 0.0
    %1036 = vmatprep.subr.mxu0 0.0
    %1037 = vmatpush1.msra.mxu0 0.0
    %1038 = vmatprep.subr.mxu0 0.0
    %1039 = vmatpush1.msra.mxu0 0.0
    %1040 = vmatprep.subr.mxu0 0.0
    %1041 = vmatpush1.msra.mxu0 0.0
    %1042 = vmatprep.subr.mxu0 0.0
    %1043 = vmatpush1.msra.mxu0 0.0
    %1044 = vmatprep.subr.mxu0 0.0
    %1045 = vmatpush1.msra.mxu0 0.0
    %1046 = vmatprep.subr.mxu0 0.0
    %1047 = vmatpush1.msra.mxu0 0.0
    %1048 = vmatprep.subr.mxu0 0.0
    %1049 = vmatpush1.msra.mxu0 0.0
    %1050 = vmatprep.subr.mxu0 0.0
    %1051 = vmatpush1.msra.mxu0 0.0
    %1052 = vmatprep.subr.mxu0 0.0
    %1053 = vmatpush1.msra.mxu0 0.0
    %1054 = vmatprep.subr.mxu0 0.0
    %1055 = vmatpush1.msra.mxu0 0.0
    %1056 = vmatprep.mubr.f32.mxu0 0.0
    %1057 = vmatmul.mubr.f32.gmra.mrb[0].mxu0 %v971
    %v1058 = vpop.f32.mrb[0].mxu0
    %v1059 = vadd.f32 0.0, %v1058
    %v1060 = vpop.f32.mrb[0].mxu0
    %1061 = vmatprep.mubr.f32.mxu0 0.0
    %1062 = vmatmul.mubr.f32.gmra.mrb[0].mxu0 %v972
    %v1063 = vpop.f32.mrb[0].mxu0
    %v1064 = vadd.f32 0.0, %v1063
    %v1065 = vpop.f32.mrb[0].mxu0
    %1066 = vmatprep.mubr.f32.mxu0 0.0
    %1067 = vmatmul.mubr.f32.gmra.mrb[0].mxu0 %v973
    %v1068 = vpop.f32.mrb[0].mxu0
    %v1069 = vadd.f32 0.0, %v1068
    %v1070 = vpop.f32.mrb[0].mxu0
    %1071 = vmatprep.mubr.f32.mxu0 0.0
    %1072 = vmatmul.mubr.f32.gmra.mrb[0].mxu0 %v974
    %v1073 = vpop.f32.mrb[0].mxu0
    %v1074 = vadd.f32 0.0, %v1073
    %v1075 = vpop.f32.mrb[0].mxu0
    %1076 = vdwg.mxu0
    %v1077 = vadd.f32 %v953, %v1059
    %v1078 = vadd.f32 %v958, %v1064
    %v1079 = vadd.f32 %v963, %v1069
    %v1080 = vadd.f32 %v968, %v1074
    %v1081 = vld [vmem:[%s6] sm:$0x1]
    %v1082 = vld [vmem:[%s7] sm:$0x1]
    %1083 = vmatprep.subr.mxu0 0.0
    %1084 = vmatpush1.msra.mxu0 %v1077
    %1085 = vmatprep.subr.mxu0 0.0
    %1086 = vmatpush1.msra.mxu0 %v1078
    %1087 = vmatprep.subr.mxu0 0.0
    %1088 = vmatpush1.msra.mxu0 %v1079
    %1089 = vmatprep.subr.mxu0 0.0
    %1090 = vmatpush1.msra.mxu0 %v1080
    %1091 = vmatprep.subr.mxu0 0.0
    %1092 = vmatpush1.msra.mxu0 0.0
    %1093 = vmatprep.subr.mxu0 0.0
    %1094 = vmatpush1.msra.mxu0 0.0
    %1095 = vmatprep.subr.mxu0 0.0
    %1096 = vmatpush1.msra.mxu0 0.0
    %1097 = vmatprep.subr.mxu0 0.0
    %1098 = vmatpush1.msra.mxu0 0.0
    %1099 = vmatprep.subr.mxu0 0.0
    %1100 = vmatpush1.msra.mxu0 0.0
    %1101 = vmatprep.subr.mxu0 0.0
    %1102 = vmatpush1.msra.mxu0 0.0
    %1103 = vmatprep.subr.mxu0 0.0
    %1104 = vmatpush1.msra.mxu0 0.0
    %1105 = vmatprep.subr.mxu0 0.0
    %1106 = vmatpush1.msra.mxu0 0.0
    %1107 = vmatprep.subr.mxu0 0.0
    %1108 = vmatpush1.msra.mxu0 0.0
    %1109 = vmatprep.subr.mxu0 0.0
    %1110 = vmatpush1.msra.mxu0 0.0
    %1111 = vmatprep.subr.mxu0 0.0
    %1112 = vmatpush1.msra.mxu0 0.0
    %1113 = vmatprep.subr.mxu0 0.0
    %1114 = vmatpush1.msra.mxu0 0.0
    %1115 = vmatprep.subr.mxu0 0.0
    %1116 = vmatpush1.msra.mxu0 0.0
    %1117 = vmatprep.subr.mxu0 0.0
    %1118 = vmatpush1.msra.mxu0 0.0
    %1119 = vmatprep.subr.mxu0 0.0
    %1120 = vmatpush1.msra.mxu0 0.0
    %1121 = vmatprep.subr.mxu0 0.0
    %1122 = vmatpush1.msra.mxu0 0.0
    %1123 = vmatprep.subr.mxu0 0.0
    %1124 = vmatpush1.msra.mxu0 0.0
    %1125 = vmatprep.subr.mxu0 0.0
    %1126 = vmatpush1.msra.mxu0 0.0
    %1127 = vmatprep.subr.mxu0 0.0
    %1128 = vmatpush1.msra.mxu0 0.0
    %1129 = vmatprep.subr.mxu0 0.0
    %1130 = vmatpush1.msra.mxu0 0.0
    %1131 = vmatprep.subr.mxu0 0.0
    %1132 = vmatpush1.msra.mxu0 0.0
    %1133 = vmatprep.subr.mxu0 0.0
    %1134 = vmatpush1.msra.mxu0 0.0
    %1135 = vmatprep.subr.mxu0 0.0
    %1136 = vmatpush1.msra.mxu0 0.0
    %1137 = vmatprep.subr.mxu0 0.0
    %1138 = vmatpush1.msra.mxu0 0.0
    %1139 = vmatprep.subr.mxu0 0.0
    %1140 = vmatpush1.msra.mxu0 0.0
    %1141 = vmatprep.subr.mxu0 0.0
    %1142 = vmatpush1.msra.mxu0 0.0
    %1143 = vmatprep.subr.mxu0 0.0
    %1144 = vmatpush1.msra.mxu0 0.0
    %1145 = vmatprep.subr.mxu0 0.0
    %1146 = vmatpush1.msra.mxu0 0.0
    %1147 = vmatprep.mubr.f32.mxu0 0.0
    %1148 = vmatmul.mubr.f32.gmra.mrb[0].mxu0 %v422
    %v1149 = vpop.f32.mrb[0].mxu0
    %v1150 = vadd.f32 0.0, %v1149
    %v1151 = vpop.f32.mrb[0].mxu0
    %1152 = vdwg.mxu0
    %v1153 = vld [vmem:[#allocation9] sm:$0xff]
    %v1154 = vld [vmem:[#allocation9 + $0x8] sm:$0xff]
    %v1155 = vld [vmem:[#allocation9 + $0x10] sm:$0xff]
    %v1156 = vld [vmem:[#allocation9 + $0x18] sm:$0xff]
    %v1157 = vld [vmem:[#allocation9 + $0x20] sm:$0xff]
    %v1158 = vld [vmem:[#allocation9 + $0x28] sm:$0xff]
    %v1159 = vld [vmem:[#allocation9 + $0x30] sm:$0xff]
    %v1160 = vld [vmem:[#allocation9 + $0x38] sm:$0xff]
    %v1161 = vld [vmem:[#allocation9 + $0x40] sm:$0xff]
    %v1162 = vld [vmem:[#allocation9 + $0x48] sm:$0xff]
    %v1163 = vld [vmem:[#allocation9 + $0x50] sm:$0xff]
    %v1164 = vld [vmem:[#allocation9 + $0x58] sm:$0xff]
    %v1165 = vld [vmem:[#allocation9 + $0x60] sm:$0xff]
    %v1166 = vld [vmem:[#allocation9 + $0x68] sm:$0xff]
    %v1167 = vld [vmem:[#allocation9 + $0x70] sm:$0xff]
    %v1168 = vld [vmem:[#allocation9 + $0x78] sm:$0xff]
    %1169 = vmatprep.subr.mxu0 0.0
    %1170 = vmatpush1.msra.mxu0 %v1153
    %1171 = vmatprep.subr.mxu0 0.0
    %1172 = vmatpush1.msra.mxu0 %v1154
    %1173 = vmatprep.subr.mxu0 0.0
    %1174 = vmatpush1.msra.mxu0 %v1155
    %1175 = vmatprep.subr.mxu0 0.0
    %1176 = vmatpush1.msra.mxu0 %v1156
    %1177 = vmatprep.subr.mxu0 0.0
    %1178 = vmatpush1.msra.mxu0 %v1157
    %1179 = vmatprep.subr.mxu0 0.0
    %1180 = vmatpush1.msra.mxu0 %v1158
    %1181 = vmatprep.subr.mxu0 0.0
    %1182 = vmatpush1.msra.mxu0 %v1159
    %1183 = vmatprep.subr.mxu0 0.0
    %1184 = vmatpush1.msra.mxu0 %v1160
    %1185 = vmatprep.subr.mxu0 0.0
    %1186 = vmatpush1.msra.mxu0 %v1161
    %1187 = vmatprep.subr.mxu0 0.0
    %1188 = vmatpush1.msra.mxu0 %v1162
    %1189 = vmatprep.subr.mxu0 0.0
    %1190 = vmatpush1.msra.mxu0 %v1163
    %1191 = vmatprep.subr.mxu0 0.0
    %1192 = vmatpush1.msra.mxu0 %v1164
    %1193 = vmatprep.subr.mxu0 0.0
    %1194 = vmatpush1.msra.mxu0 %v1165
    %1195 = vmatprep.subr.mxu0 0.0
    %1196 = vmatpush1.msra.mxu0 %v1166
    %1197 = vmatprep.subr.mxu0 0.0
    %1198 = vmatpush1.msra.mxu0 %v1167
    %1199 = vmatprep.subr.mxu0 0.0
    %1200 = vmatpush1.msra.mxu0 %v1168
    %1201 = vmatprep.subr.mxu0 0.0
    %1202 = vmatpush1.msra.mxu0 0.0
    %1203 = vmatprep.subr.mxu0 0.0
    %1204 = vmatpush1.msra.mxu0 0.0
    %1205 = vmatprep.subr.mxu0 0.0
    %1206 = vmatpush1.msra.mxu0 0.0
    %1207 = vmatprep.subr.mxu0 0.0
    %1208 = vmatpush1.msra.mxu0 0.0
    %1209 = vmatprep.subr.mxu0 0.0
    %1210 = vmatpush1.msra.mxu0 0.0
    %1211 = vmatprep.subr.mxu0 0.0
    %1212 = vmatpush1.msra.mxu0 0.0
    %1213 = vmatprep.subr.mxu0 0.0
    %1214 = vmatpush1.msra.mxu0 0.0
    %1215 = vmatprep.subr.mxu0 0.0
    %1216 = vmatpush1.msra.mxu0 0.0
    %1217 = vmatprep.subr.mxu0 0.0
    %1218 = vmatpush1.msra.mxu0 0.0
    %1219 = vmatprep.subr.mxu0 0.0
    %1220 = vmatpush1.msra.mxu0 0.0
    %1221 = vmatprep.subr.mxu0 0.0
    %1222 = vmatpush1.msra.mxu0 0.0
    %1223 = vmatprep.subr.mxu0 0.0
    %1224 = vmatpush1.msra.mxu0 0.0
    %1225 = vmatprep.subr.mxu0 0.0
    %1226 = vmatpush1.msra.mxu0 0.0
    %1227 = vmatprep.subr.mxu0 0.0
    %1228 = vmatpush1.msra.mxu0 0.0
    %1229 = vmatprep.subr.mxu0 0.0
    %1230 = vmatpush1.msra.mxu0 0.0
    %1231 = vmatprep.subr.mxu0 0.0
    %1232 = vmatpush1.msra.mxu0 0.0
    %1233 = vmatprep.mubr.f32.mxu0 0.0
    %1234 = vmatmul.mubr.f32.gmra.mrb[0].mxu0 %v1150
    %v1235 = vpop.f32.mrb[0].mxu0
    %v1236 = vadd.f32 0.0, %v1235
    %v1237 = vpop.f32.mrb[0].mxu0
    %1238 = vdwg.mxu0
    %v1239 = vlaneseq
    %v1240 = vshrl.u32 %v1239, 7
    %v1241 = vsub.s32 0, %v1240
    %v1242 = vrot.slane %v1236, %v1241
    %v1243 = vsub.f32 %v1077, %v1242
    %v1244 = vsub.f32 %v1078, %v1242
    %v1245 = vsub.f32 %v1079, %v1242
    %v1246 = vsub.f32 %v1080, %v1242
    %v1247 = vmul.f32 %v1243, %v1243
    %v1248 = vmul.f32 %v1244, %v1244
    %v1249 = vmul.f32 %v1245, %v1245
    %v1250 = vmul.f32 %v1246, %v1246
    %1251 = vmatprep.subr.mxu0 0.0
    %1252 = vmatpush1.msra.mxu0 %v1247
    %1253 = vmatprep.subr.mxu0 0.0
    %1254 = vmatpush1.msra.mxu0 %v1248
    %1255 = vmatprep.subr.mxu0 0.0
    %1256 = vmatpush1.msra.mxu0 %v1249
    %1257 = vmatprep.subr.mxu0 0.0
    %1258 = vmatpush1.msra.mxu0 %v1250
    %1259 = vmatprep.subr.mxu0 0.0
    %1260 = vmatpush1.msra.mxu0 0.0
    %1261 = vmatprep.subr.mxu0 0.0
    %1262 = vmatpush1.msra.mxu0 0.0
    %1263 = vmatprep.subr.mxu0 0.0
    %1264 = vmatpush1.msra.mxu0 0.0
    %1265 = vmatprep.subr.mxu0 0.0
    %1266 = vmatpush1.msra.mxu0 0.0
    %1267 = vmatprep.subr.mxu0 0.0
    %1268 = vmatpush1.msra.mxu0 0.0
    %1269 = vmatprep.subr.mxu0 0.0
    %1270 = vmatpush1.msra.mxu0 0.0
    %1271 = vmatprep.subr.mxu0 0.0
    %1272 = vmatpush1.msra.mxu0 0.0
    %1273 = vmatprep.subr.mxu0 0.0
    %1274 = vmatpush1.msra.mxu0 0.0
    %1275 = vmatprep.subr.mxu0 0.0
    %1276 = vmatpush1.msra.mxu0 0.0
    %1277 = vmatprep.subr.mxu0 0.0
    %1278 = vmatpush1.msra.mxu0 0.0
    %1279 = vmatprep.subr.mxu0 0.0
    %1280 = vmatpush1.msra.mxu0 0.0
    %1281 = vmatprep.subr.mxu0 0.0
    %1282 = vmatpush1.msra.mxu0 0.0
    %1283 = vmatprep.subr.mxu0 0.0
    %1284 = vmatpush1.msra.mxu0 0.0
    %1285 = vmatprep.subr.mxu0 0.0
    %1286 = vmatpush1.msra.mxu0 0.0
    %1287 = vmatprep.subr.mxu0 0.0
    %1288 = vmatpush1.msra.mxu0 0.0
    %1289 = vmatprep.subr.mxu0 0.0
    %1290 = vmatpush1.msra.mxu0 0.0
    %1291 = vmatprep.subr.mxu0 0.0
    %1292 = vmatpush1.msra.mxu0 0.0
    %1293 = vmatprep.subr.mxu0 0.0
    %1294 = vmatpush1.msra.mxu0 0.0
    %1295 = vmatprep.subr.mxu0 0.0
    %1296 = vmatpush1.msra.mxu0 0.0
    %1297 = vmatprep.subr.mxu0 0.0
    %1298 = vmatpush1.msra.mxu0 0.0
    %1299 = vmatprep.subr.mxu0 0.0
    %1300 = vmatpush1.msra.mxu0 0.0
    %1301 = vmatprep.subr.mxu0 0.0
    %1302 = vmatpush1.msra.mxu0 0.0
    %1303 = vmatprep.subr.mxu0 0.0
    %1304 = vmatpush1.msra.mxu0 0.0
    %1305 = vmatprep.subr.mxu0 0.0
    %1306 = vmatpush1.msra.mxu0 0.0
    %1307 = vmatprep.subr.mxu0 0.0
    %1308 = vmatpush1.msra.mxu0 0.0
    %1309 = vmatprep.subr.mxu0 0.0
    %1310 = vmatpush1.msra.mxu0 0.0
    %1311 = vmatprep.subr.mxu0 0.0
    %1312 = vmatpush1.msra.mxu0 0.0
    %1313 = vmatprep.subr.mxu0 0.0
    %1314 = vmatpush1.msra.mxu0 0.0
    %1315 = vmatprep.mubr.f32.mxu0 0.0
    %1316 = vmatmul.mubr.f32.gmra.mrb[0].mxu0 %v422
    %v1317 = vpop.f32.mrb[0].mxu0
    %v1318 = vadd.f32 0.0, %v1317
    %v1319 = vpop.f32.mrb[0].mxu0
    %1320 = vdwg.mxu0
    %1321 = vmatprep.subr.mxu0 0.0
    %1322 = vmatpush1.msra.mxu0 %v1153
    %1323 = vmatprep.subr.mxu0 0.0
    %1324 = vmatpush1.msra.mxu0 %v1154
    %1325 = vmatprep.subr.mxu0 0.0
    %1326 = vmatpush1.msra.mxu0 %v1155
    %1327 = vmatprep.subr.mxu0 0.0
    %1328 = vmatpush1.msra.mxu0 %v1156
    %1329 = vmatprep.subr.mxu0 0.0
    %1330 = vmatpush1.msra.mxu0 %v1157
    %1331 = vmatprep.subr.mxu0 0.0
    %1332 = vmatpush1.msra.mxu0 %v1158
    %1333 = vmatprep.subr.mxu0 0.0
    %1334 = vmatpush1.msra.mxu0 %v1159
    %1335 = vmatprep.subr.mxu0 0.0
    %1336 = vmatpush1.msra.mxu0 %v1160
    %1337 = vmatprep.subr.mxu0 0.0
    %1338 = vmatpush1.msra.mxu0 %v1161
    %1339 = vmatprep.subr.mxu0 0.0
    %1340 = vmatpush1.msra.mxu0 %v1162
    %1341 = vmatprep.subr.mxu0 0.0
    %1342 = vmatpush1.msra.mxu0 %v1163
    %1343 = vmatprep.subr.mxu0 0.0
    %1344 = vmatpush1.msra.mxu0 %v1164
    %1345 = vmatprep.subr.mxu0 0.0
    %1346 = vmatpush1.msra.mxu0 %v1165
    %1347 = vmatprep.subr.mxu0 0.0
    %1348 = vmatpush1.msra.mxu0 %v1166
    %1349 = vmatprep.subr.mxu0 0.0
    %1350 = vmatpush1.msra.mxu0 %v1167
    %1351 = vmatprep.subr.mxu0 0.0
    %1352 = vmatpush1.msra.mxu0 %v1168
    %1353 = vmatprep.subr.mxu0 0.0
    %1354 = vmatpush1.msra.mxu0 0.0
    %1355 = vmatprep.subr.mxu0 0.0
    %1356 = vmatpush1.msra.mxu0 0.0
    %1357 = vmatprep.subr.mxu0 0.0
    %1358 = vmatpush1.msra.mxu0 0.0
    %1359 = vmatprep.subr.mxu0 0.0
    %1360 = vmatpush1.msra.mxu0 0.0
    %1361 = vmatprep.subr.mxu0 0.0
    %1362 = vmatpush1.msra.mxu0 0.0
    %1363 = vmatprep.subr.mxu0 0.0
    %1364 = vmatpush1.msra.mxu0 0.0
    %1365 = vmatprep.subr.mxu0 0.0
    %1366 = vmatpush1.msra.mxu0 0.0
    %1367 = vmatprep.subr.mxu0 0.0
    %1368 = vmatpush1.msra.mxu0 0.0
    %1369 = vmatprep.subr.mxu0 0.0
    %1370 = vmatpush1.msra.mxu0 0.0
    %1371 = vmatprep.subr.mxu0 0.0
    %1372 = vmatpush1.msra.mxu0 0.0
    %1373 = vmatprep.subr.mxu0 0.0
    %1374 = vmatpush1.msra.mxu0 0.0
    %1375 = vmatprep.subr.mxu0 0.0
    %1376 = vmatpush1.msra.mxu0 0.0
    %1377 = vmatprep.subr.mxu0 0.0
    %1378 = vmatpush1.msra.mxu0 0.0
    %1379 = vmatprep.subr.mxu0 0.0
    %1380 = vmatpush1.msra.mxu0 0.0
    %1381 = vmatprep.subr.mxu0 0.0
    %1382 = vmatpush1.msra.mxu0 0.0
    %1383 = vmatprep.subr.mxu0 0.0
    %1384 = vmatpush1.msra.mxu0 0.0
    %1385 = vmatprep.mubr.f32.mxu0 0.0
    %1386 = vmatmul.mubr.f32.gmra.mrb[0].mxu0 %v1318
    %v1387 = vpop.f32.mrb[0].mxu0
    %v1388 = vadd.f32 1e-05, %v1387
    %v1389 = vpop.f32.mrb[0].mxu0
    %1390 = vdwg.mxu0
    %v1391 = vrsqrt.pop %v1388
    %v1392 = vmul.f32 %v1391, %v1081
    %v1393 = vlaneseq
    %v1394 = vshrl.u32 %v1393, 7
    %v1395 = vsub.s32 0, %v1394
    %v1396 = vrot.slane %v1392, %v1395
    %v1397 = vmul.f32 %v1243, %v1396
    %v1398 = vmul.f32 %v1244, %v1396
    %v1399 = vmul.f32 %v1245, %v1396
    %v1400 = vmul.f32 %v1246, %v1396
    %v1402 = vlaneseq
    %v1403 = vshrl.u32 %v1402, 7
    %v1404 = vsub.s32 0, %v1403
    %v1405 = vrot.slane %v1082, %v1404
    %v1407 = vadd.f32 %v1397, %v1405
    %v1408 = vadd.f32 %v1398, %v1405
    %v1409 = vadd.f32 %v1399, %v1405
    %v1410 = vadd.f32 %v1400, %v1405
    %v1411 = vadd.f32 %v1407, %v89
    %v1412 = vadd.f32 %v1408, %v90
    %v1413 = vadd.f32 %v1409, %v91
    %v1414 = vadd.f32 %v1410, %v92
    %v1415 = vmax.f32 %v1411, 0.0
    %v1416 = vmax.f32 %v1412, 0.0
    %v1417 = vmax.f32 %v1413, 0.0
    %v1418 = vmax.f32 %v1414, 0.0
    %1419 = vst [vmem:[#allocation11] sm:$0xff] %v1415
    %1420 = vst [vmem:[#allocation11 + $0x8] sm:$0xff] %v1416
    %1421 = vst [vmem:[#allocation11 + $0x10] sm:$0xff] %v1417
    %1422 = vst [vmem:[#allocation11 + $0x18] sm:$0xff] %v1418
    // Predicated region
    $region50: #{tpu_custom_call.1} parent=1 // pred_check
      _
    $region51: #{tpu_custom_call.1} parent=1 // pred_check_branch
      %1424 = sbr.rel (0) target = $region53
    $region52: #{tpu_custom_call.1} parent=1 // pred_region
      %s1426 = ssub.s32 512, 512
      %1427 = vsyncadd [#allocation5], %s1426
      %s1428 = sshll.u32 [#allocation11], 4
      %s1429 = int_to_ptr.vmem [resolvable:$true] %s1428
      %1434 = dma.vmem_to_hbm [thread:$0]  %s1429, 512, %s8, [#allocation5], 128, 128, 8
    $region53: #{tpu_custom_call.1} parent=1 // pred_fallthru
      _
    // Predicated region
    $region54: #{tpu_custom_call.1} parent=1 // pred_check
      _
    $region55: #{tpu_custom_call.1} parent=1 // pred_check_branch
      %1436 = sbr.rel (0) target = $region57
    $region56: #{tpu_custom_call.1} parent=1 // pred_region
      %1437 = dma.done [#allocation5], 512
    $region57: #{tpu_custom_call.1} parent=1 // pred_fallthru
      _
    %1438 = vsyncpa [#allocation4], 1
    %1439 = vsyncpa [#allocation7], 1
    %1440 = vsyncpa [#allocation10], 1
    %1441 = vsyncpa [#allocation5], 1

</llo_original>
